<compile_context>
chip_gen: v7x
topology: tpu7x:2x2x1
jax: 0.10.0
libtpu: 0.0.40
codegen_flags: <defaults>
</compile_context>

<pallas_src>
import functools

import jax
import jax.numpy as jnp
from jax import lax
from jax.experimental import pallas as pl
from jax.experimental.pallas import tpu as pltpu


# ----------------------------------------------------------------------------
# 2-D relative positional bias (bilinear interpolation of a learned grid).
# Mirrors PositionalEmbeddings2DWithBilinearInterpolation +
# compute_positional_embedding_coefficients exactly, in plain JAX.
# TODO(synk): the data-dependent 2-D gather (embeddings[x0, y0]) has no clean
# Pallas TPU lowering (an in-kernel one-hot matmul would force lane<->sublane
# relayouts), so this bias is computed here and fed to the kernel as an input.
# ----------------------------------------------------------------------------
def rel_pos_bias(positions, embeddings, spatial_size, spatial_origin,
                 out_dtype=jnp.float32):
    """positions: (B, N, 2); embeddings: (Gx, Gy, H). Returns (B, H, N, N)."""
    positions = positions.astype(jnp.float32)
    gx, gy, _ = embeddings.shape
    emb = embeddings.astype(jnp.float32)

    # rel[b, i, j] = p_i - p_j  (entry (i, j): position of token i relative to j)
    rel = positions[:, :, None, :] - positions[:, None, :, :]          # (B, N, N, 2)
    x = (rel[..., 0] - spatial_origin[0]) / spatial_size[0] * gx
    y = (rel[..., 1] - spatial_origin[1]) / spatial_size[1] * gy

    x0 = jnp.floor(x).astype(jnp.int32)
    x1 = x0 + 1
    y0 = jnp.floor(y).astype(jnp.int32)
    y1 = y0 + 1
    x0 = jnp.clip(x0, 0, gx - 1)
    x1 = jnp.clip(x1, 0, gx - 1)
    y0 = jnp.clip(y0, 0, gy - 1)
    y1 = jnp.clip(y1, 0, gy - 1)

    f00 = emb[x0, y0]                                                   # (B, N, N, H)
    f01 = emb[x0, y1]
    f10 = emb[x1, y0]
    f11 = emb[x1, y1]

    dx = (x - x0.astype(jnp.float32))[..., None]
    dy = (y - y0.astype(jnp.float32))[..., None]
    fxy0 = f00 * (1.0 - dx) + f10 * dx
    fxy1 = f01 * (1.0 - dx) + f11 * dx
    fxy = fxy0 * (1.0 - dy) + fxy1 * dy                                 # (B, N, N, H)
    return jnp.transpose(fxy, (0, 3, 1, 2)).astype(out_dtype)           # (B, H, N, N)


# ----------------------------------------------------------------------------
# Pallas kernel: full MHA forward (one batch element per grid step).
# ----------------------------------------------------------------------------
def mha_relpos_kernel(
    x_ref,        # (N, D)           compute dtype (f32 or bf16)
    bias_ref,     # (H, N, N)        rel-pos logits bias (f32 or bf16)
    wq_ref, bq_ref, wk_ref, bk_ref, wv_ref, bv_ref,   # projections (scale in W_q)
    wo_ref, bo_ref,                                   # output projection
    o_ref,        # (N, D)
    ctx_ref,      # VMEM scratch (N, H*d_v), compute dtype
    *, n_heads, d_k, d_v,
):
    cdt = x_ref.dtype
    x = x_ref[...]                                     # (N, D)

    # --- Q/K/V projections on the MXU, f32 accumulation, kept in compute dtype ---
    # (1/sqrt(d_k) is already folded into W_q / b_q by the wrapper.)
    q = (jnp.dot(x, wq_ref[...], preferred_element_type=jnp.float32)
         + bq_ref[...].astype(jnp.float32)).astype(cdt)                 # (N, H*d_k)
    k = (jnp.dot(x, wk_ref[...], preferred_element_type=jnp.float32)
         + bk_ref[...].astype(jnp.float32)).astype(cdt)                 # (N, H*d_k)
    v = (jnp.dot(x, wv_ref[...], preferred_element_type=jnp.float32)
         + bv_ref[...].astype(jnp.float32)).astype(cdt)                 # (N, H*d_v)

    # --- per-head attention; ctx written into a lane slab, one W_o matmul after ---
    # TODO(synk): for large n_heads switch this static unroll to lax.fori_loop
    # with pl.ds slicing to bound live ranges.
    for h in range(n_heads):                           # static unroll over heads
        qh = q[:, h * d_k:(h + 1) * d_k]               # (N, d_k)  (pre-scaled)
        kh = k[:, h * d_k:(h + 1) * d_k]               # (N, d_k)
        vh = v[:, h * d_v:(h + 1) * d_v]               # (N, d_v)

        # QK^T: contract d_k directly (no kh.T relayout through the XLU)
        s = lax.dot_general(qh, kh, (((1,), (1,)), ((), ())),
                            preferred_element_type=jnp.float32)         # (N, N)
        s = s + bias_ref[h].astype(jnp.float32)        # per-head ref slice (f32 add)

        # unnormalized softmax; normalization deferred to ctx (N x d_v, not N x N)
        s = s - jnp.max(s, axis=-1, keepdims=True)
        p = jnp.exp(s)                                 # (N, N), values in (0, 1]
        denom = jnp.sum(p, axis=-1, keepdims=True)     # (N, 1)

        ctx = jnp.dot(p.astype(cdt), vh,
                      preferred_element_type=jnp.float32)               # (N, d_v)
        ctx = ctx * pl.reciprocal(denom, approx=True)  # EUP slot, broadcast over d_v
        ctx_ref[:, h * d_v:(h + 1) * d_v] = ctx.astype(cdt)

    # --- single head-merged output projection: contraction width = H*d_v ----------
    out = (jnp.dot(ctx_ref[...], wo_ref[...], preferred_element_type=jnp.float32)
           + bo_ref[...].astype(jnp.float32))                           # (N, D)
    # TODO(synk): optional `mask` argument and return_attn=True path not implemented
    # (module defaults: mask=None, return_attn=False).
    o_ref[...] = out.astype(o_ref.dtype)


# ----------------------------------------------------------------------------
# Wrapper: bias precompute + one pallas_call, grid over batch.
# ----------------------------------------------------------------------------
def mha_2d_relpos(x, positions, params, *, n_heads, max_spatial_distance,
                  compute_dtype=jnp.float32, bias_dtype=None):
    B, N, D = x.shape
    hk = params["wq"].shape[1]
    hv = params["wv"].shape[1]
    d_k = hk // n_heads
    d_v = hv // n_heads
    scale = 1.0 / float(d_k) ** 0.5
    out_dtype = x.dtype
    cdt = compute_dtype
    bdt = bias_dtype if bias_dtype is not None else cdt   # bf16 bias halves its DMA

    spatial_size = (2 * max_spatial_distance[0] + 1, 2 * max_spatial_distance[1] + 1)
    spatial_origin = (-max_spatial_distance[0], -max_spatial_distance[1])
    bias = rel_pos_bias(positions, params["emb"], spatial_size, spatial_origin,
                        out_dtype=bdt)

    xc = x.astype(cdt)
    # Fold the 1/sqrt(d_k) attention scale into W_q / b_q (zero in-kernel cost).
    wq = (params["wq"] * scale).astype(cdt)
    bq = (params["bq"] * scale).astype(cdt)
    wk, bk = params["wk"].astype(cdt), params["bk"].astype(cdt)
    wv, bv = params["wv"].astype(cdt), params["bv"].astype(cdt)
    wo, bo = params["wo"].astype(cdt), params["bo"].astype(cdt)

    kernel = functools.partial(mha_relpos_kernel, n_heads=n_heads, d_k=d_k, d_v=d_v)

    def rep(shape):
        # full-array block, constant index map (batch-invariant VMEM resident)
        return pl.BlockSpec(shape, lambda b: (0,) * len(shape))

    grid_spec = pltpu.PrefetchScalarGridSpec(
        num_scalar_prefetch=0,
        grid=(B,),
        in_specs=[
            pl.BlockSpec((None, N, D), lambda b: (b, 0, 0)),              # X
            pl.BlockSpec((None, n_heads, N, N), lambda b: (b, 0, 0, 0)),  # rel-pos bias
            rep((D, hk)), rep((1, hk)),                                   # W_q, b_q
            rep((D, hk)), rep((1, hk)),                                   # W_k, b_k
            rep((D, hv)), rep((1, hv)),                                   # W_v, b_v
            rep((hv, D)), rep((1, D)),                                    # W_o, b_o
        ],
        out_specs=pl.BlockSpec((None, N, D), lambda b: (b, 0, 0)),
        scratch_shapes=[pltpu.VMEM((N, hv), cdt)],                        # ctx slab
    )

    return pl.pallas_call(
        kernel,
        out_shape=jax.ShapeDtypeStruct((B, N, D), out_dtype),
        grid_spec=grid_spec,
        compiler_params=pltpu.CompilerParams(
            dimension_semantics=("parallel",),
            # 48 MiB: well above the 16/32 MiB scoped defaults, below v7x's 64 MiB.
            vmem_limit_bytes=48 * 1024 * 1024,
        ),
    )(xc, bias, wq, bq, wk, bk, wv, bv, wo, bo)


# ----------------------------------------------------------------------------
# Pure-JAX reference (mirrors the PyTorch forward) for verification.
# ----------------------------------------------------------------------------
def reference_mha(x, positions, params, *, n_heads, max_spatial_distance):
    B, N, D = x.shape
    hk = params["wq"].shape[1]
    hv = params["wv"].shape[1]
    d_k = hk // n_heads
    d_v = hv // n_heads
    scale = 1.0 / float(d_k) ** 0.5
    spatial_size = (2 * max_spatial_distance[0] + 1, 2 * max_spatial_distance[1] + 1)
    spatial_origin = (-max_spatial_distance[0], -max_spatial_distance[1])

    q = x @ params["wq"] + params["bq"]
    k = x @ params["wk"] + params["bk"]
    v = x @ params["wv"] + params["bv"]
    q = q.reshape(B, N, n_heads, d_k).transpose(0, 2, 1, 3)
    k = k.reshape(B, N, n_heads, d_k).transpose(0, 2, 1, 3)
    v = v.reshape(B, N, n_heads, d_v).transpose(0, 2, 1, 3)

    s = jnp.einsum("bhnd,bhmd->bhnm", q, k) * scale
    s = s + rel_pos_bias(positions, params["emb"], spatial_size, spatial_origin)
    attn = jax.nn.softmax(s, axis=-1)
    ctx = jnp.einsum("bhnm,bhmd->bhnd", attn, v)
    ctx = ctx.transpose(0, 2, 1, 3).reshape(B, N, hv)
    return ctx @ params["wo"] + params["bo"]


# ----------------------------------------------------------------------------
# Deterministic parameter init + driver.
# ----------------------------------------------------------------------------
def init_params(key, d_model, n_heads, d_k, d_v, grid_shape):
    ks = jax.random.split(key, 9)
    hk, hv = n_heads * d_k, n_heads * d_v
    return {
        "wq": jax.random.normal(ks[0], (d_model, hk), jnp.float32) * 0.05,
        "bq": jax.random.normal(ks[1], (1, hk), jnp.float32) * 0.02,
        "wk": jax.random.normal(ks[2], (d_model, hk), jnp.float32) * 0.05,
        "bk": jax.random.normal(ks[3], (1, hk), jnp.float32) * 0.02,
        "wv": jax.random.normal(ks[4], (d_model, hv), jnp.float32) * 0.05,
        "bv": jax.random.normal(ks[5], (1, hv), jnp.float32) * 0.02,
        "wo": jax.random.normal(ks[6], (hv, d_model), jnp.float32) * 0.05,
        "bo": jax.random.normal(ks[7], (1, d_model), jnp.float32) * 0.02,
        "emb": jax.random.normal(ks[8], (grid_shape[0], grid_shape[1], n_heads),
                                 jnp.float32),
    }


if __name__ == "__main__":
    # Small shapes consistent with the module.
    # TODO(synk): D=32 / N=8 are lane/sublane-sparse; real deployments should pad
    # d_model to a multiple of 128 (or batch several sequences per grid step).
    B, N, D = 2, 8, 32               # batch, seq, d_model
    n_heads = 4
    d_k = d_v = D // n_heads
    max_spatial_distance = (5, 5)
    embeddings_grid_shape = (6, 6)

    key = jax.random.PRNGKey(0)
    kx, kp, kpar = jax.random.split(key, 3)
    x = jax.random.normal(kx, (B, N, D), jnp.float32)
    positions = jax.random.uniform(kp, (B, N, 2), dtype=jnp.float32,
                                   minval=-2.5, maxval=2.5)
    params = init_params(kpar, D, n_heads, d_k, d_v, embeddings_grid_shape)

    ref = reference_mha(x, positions, params, n_heads=n_heads,
                        max_spatial_distance=max_spatial_distance)

    # f32 compute path (tight check; bias stays f32 here)
    out = mha_2d_relpos(x, positions, params, n_heads=n_heads,
                        max_spatial_distance=max_spatial_distance,
                        compute_dtype=jnp.float32)
    out = jax.block_until_ready(out)
    assert out.shape == (B, N, D)
    assert jnp.allclose(out, ref, atol=5e-3, rtol=5e-3), float(
        jnp.max(jnp.abs(out - ref)))

    # bf16 compute path (bf16 weights, activations AND rel-pos bias -> halves the
    # dominant DMA / VMEM residency; f32 accumulation and softmax math)
    out_bf16 = mha_2d_relpos(x, positions, params, n_heads=n_heads,
                             max_spatial_distance=max_spatial_distance,
                             compute_dtype=jnp.bfloat16,
                             bias_dtype=jnp.bfloat16)
    out_bf16 = jax.block_until_ready(out_bf16)
    assert jnp.allclose(out_bf16.astype(jnp.float32), ref, atol=3e-2, rtol=3e-2), \
        float(jnp.max(jnp.abs(out_bf16.astype(jnp.float32) - ref)))

    print("KERNEL_OK")
</pallas_src>

<mosaic_0001>
module attributes {stable_mosaic.version = 11 : i64} {
  func.func @mha_relpos_kernel(%arg0: i32, %arg1: memref<1x8x32xf32, #tpu.memory_space<vmem>>, %arg2: memref<1x4x8x8xf32, #tpu.memory_space<vmem>>, %arg3: memref<32x32xf32, #tpu.memory_space<vmem>>, %arg4: memref<1x32xf32, #tpu.memory_space<vmem>>, %arg5: memref<32x32xf32, #tpu.memory_space<vmem>>, %arg6: memref<1x32xf32, #tpu.memory_space<vmem>>, %arg7: memref<32x32xf32, #tpu.memory_space<vmem>>, %arg8: memref<1x32xf32, #tpu.memory_space<vmem>>, %arg9: memref<32x32xf32, #tpu.memory_space<vmem>>, %arg10: memref<1x32xf32, #tpu.memory_space<vmem>>, %arg11: memref<1x8x32xf32, #tpu.memory_space<vmem>>, %arg12: memref<8x32xf32, #tpu.memory_space<vmem>>) attributes {dimension_semantics = [#tpu.dimension_semantics<parallel>], iteration_bounds = array<i64: 2>, scalar_prefetch = 0 : i64, scratch_operands = 1 : i64, tpu.core_type = #tpu.core_type<tc>, window_params = [{transform_indices = @transform_0, window_bounds = array<i64: 1, 8, 32>}, {transform_indices = @transform_1, window_bounds = array<i64: 1, 4, 8, 8>}, {pipeline_mode = #tpu.pipeline_mode<synchronous>, transform_indices = @transform_2, window_bounds = array<i64: 32, 32>}, {pipeline_mode = #tpu.pipeline_mode<synchronous>, transform_indices = @transform_3, window_bounds = array<i64: 1, 32>}, {pipeline_mode = #tpu.pipeline_mode<synchronous>, transform_indices = @transform_4, window_bounds = array<i64: 32, 32>}, {pipeline_mode = #tpu.pipeline_mode<synchronous>, transform_indices = @transform_5, window_bounds = array<i64: 1, 32>}, {pipeline_mode = #tpu.pipeline_mode<synchronous>, transform_indices = @transform_6, window_bounds = array<i64: 32, 32>}, {pipeline_mode = #tpu.pipeline_mode<synchronous>, transform_indices = @transform_7, window_bounds = array<i64: 1, 32>}, {pipeline_mode = #tpu.pipeline_mode<synchronous>, transform_indices = @transform_8, window_bounds = array<i64: 32, 32>}, {pipeline_mode = #tpu.pipeline_mode<synchronous>, transform_indices = @transform_9, window_bounds = array<i64: 1, 32>}, {transform_indices = @transform_10, window_bounds = array<i64: 1, 8, 32>}]} {
    %c0 = arith.constant 0 : index
    %c0_0 = arith.constant 0 : index
    %c0_1 = arith.constant 0 : index
    %0 = vector.load %arg1[%c0, %c0_0, %c0_1] : memref<1x8x32xf32, #tpu.memory_space<vmem>>, vector<1x8x32xf32>
    %1 = vector.shape_cast %0 : vector<1x8x32xf32> to vector<8x32xf32>
    %c0_2 = arith.constant 0 : index
    %c0_3 = arith.constant 0 : index
    %2 = vector.load %arg3[%c0_2, %c0_3] : memref<32x32xf32, #tpu.memory_space<vmem>>, vector<32x32xf32>
    %cst = arith.constant dense<0.000000e+00> : vector<8x32xf32>
    %3 = tpu.matmul %1, %2, %cst {dimension_numbers = #tpu.dot_dimension_numbers<[1], [0], [0], [1], [0, 0, 1, 1], [], []>} : vector<8x32xf32>, vector<32x32xf32>, vector<8x32xf32> -> vector<8x32xf32>
    %c0_4 = arith.constant 0 : index
    %c0_5 = arith.constant 0 : index
    %4 = vector.load %arg4[%c0_4, %c0_5] : memref<1x32xf32, #tpu.memory_space<vmem>>, vector<1x32xf32>
    %5 = vector.broadcast %4 : vector<1x32xf32> to vector<8x32xf32>
    %6 = arith.addf %3, %5 : vector<8x32xf32>
    %c0_6 = arith.constant 0 : index
    %c0_7 = arith.constant 0 : index
    %7 = vector.load %arg5[%c0_6, %c0_7] : memref<32x32xf32, #tpu.memory_space<vmem>>, vector<32x32xf32>
    %cst_8 = arith.constant dense<0.000000e+00> : vector<8x32xf32>
    %8 = tpu.matmul %1, %7, %cst_8 {dimension_numbers = #tpu.dot_dimension_numbers<[1], [0], [0], [1], [0, 0, 1, 1], [], []>} : vector<8x32xf32>, vector<32x32xf32>, vector<8x32xf32> -> vector<8x32xf32>
    %c0_9 = arith.constant 0 : index
    %c0_10 = arith.constant 0 : index
    %9 = vector.load %arg6[%c0_9, %c0_10] : memref<1x32xf32, #tpu.memory_space<vmem>>, vector<1x32xf32>
    %10 = vector.broadcast %9 : vector<1x32xf32> to vector<8x32xf32>
    %11 = arith.addf %8, %10 : vector<8x32xf32>
    %c0_11 = arith.constant 0 : index
    %c0_12 = arith.constant 0 : index
    %12 = vector.load %arg7[%c0_11, %c0_12] : memref<32x32xf32, #tpu.memory_space<vmem>>, vector<32x32xf32>
    %cst_13 = arith.constant dense<0.000000e+00> : vector<8x32xf32>
    %13 = tpu.matmul %1, %12, %cst_13 {dimension_numbers = #tpu.dot_dimension_numbers<[1], [0], [0], [1], [0, 0, 1, 1], [], []>} : vector<8x32xf32>, vector<32x32xf32>, vector<8x32xf32> -> vector<8x32xf32>
    %c0_14 = arith.constant 0 : index
    %c0_15 = arith.constant 0 : index
    %14 = vector.load %arg8[%c0_14, %c0_15] : memref<1x32xf32, #tpu.memory_space<vmem>>, vector<1x32xf32>
    %15 = vector.broadcast %14 : vector<1x32xf32> to vector<8x32xf32>
    %16 = arith.addf %13, %15 : vector<8x32xf32>
    %17 = vector.extract_strided_slice %6 {offsets = [0, 0], sizes = [8, 8], strides = [1, 1]} : vector<8x32xf32> to vector<8x8xf32>
    %18 = vector.extract_strided_slice %11 {offsets = [0, 0], sizes = [8, 8], strides = [1, 1]} : vector<8x32xf32> to vector<8x8xf32>
    %19 = vector.extract_strided_slice %16 {offsets = [0, 0], sizes = [8, 8], strides = [1, 1]} : vector<8x32xf32> to vector<8x8xf32>
    %cst_16 = arith.constant dense<0.000000e+00> : vector<8x8xf32>
    %20 = tpu.matmul %17, %18, %cst_16 {dimension_numbers = #tpu.dot_dimension_numbers<[1], [1], [0], [0], [0, 0, 1, 0], [], []>} : vector<8x8xf32>, vector<8x8xf32>, vector<8x8xf32> -> vector<8x8xf32>
    %c0_17 = arith.constant 0 : index
    %c0_18 = arith.constant 0 : index
    %c0_19 = arith.constant 0 : index
    %c0_20 = arith.constant 0 : index
    %21 = vector.load %arg2[%c0_17, %c0_18, %c0_19, %c0_20] : memref<1x4x8x8xf32, #tpu.memory_space<vmem>>, vector<1x1x8x8xf32>
    %22 = vector.shape_cast %21 : vector<1x1x8x8xf32> to vector<8x8xf32>
    %23 = arith.addf %20, %22 : vector<8x8xf32>
    %cst_21 = arith.constant dense<0xFF800000> : vector<8xf32>
    %24 = vector.multi_reduction <maximumf>, %23, %cst_21 [1] : vector<8x8xf32> to vector<8xf32>
    %25 = vector.shape_cast %24 : vector<8xf32> to vector<8x1xf32>
    %26 = vector.broadcast %25 : vector<8x1xf32> to vector<8x8xf32>
    %27 = arith.subf %23, %26 : vector<8x8xf32>
    %28 = math.exp %27 : vector<8x8xf32>
    %cst_22 = arith.constant dense<0.000000e+00> : vector<8xf32>
    %29 = vector.multi_reduction <add>, %28, %cst_22 [1] : vector<8x8xf32> to vector<8xf32>
    %30 = vector.shape_cast %29 : vector<8xf32> to vector<8x1xf32>
    %cst_23 = arith.constant dense<0.000000e+00> : vector<8x8xf32>
    %31 = tpu.matmul %28, %19, %cst_23 {dimension_numbers = #tpu.dot_dimension_numbers<[1], [0], [0], [1], [0, 0, 1, 1], [], []>} : vector<8x8xf32>, vector<8x8xf32>, vector<8x8xf32> -> vector<8x8xf32>
    %32 = tpu.reciprocal %30 {approx = true} : vector<8x1xf32> -> vector<8x1xf32>
    %33 = vector.broadcast %32 : vector<8x1xf32> to vector<8x8xf32>
    %34 = arith.mulf %31, %33 : vector<8x8xf32>
    %c0_24 = arith.constant 0 : index
    %c0_25 = arith.constant 0 : index
    %35 = vector.load %arg12[%c0_24, %c0_25] : memref<8x32xf32, #tpu.memory_space<vmem>>, vector<8x8xf32>
    tpu.vector_store %arg12[%c0_24, %c0_25], %34 {strides = array<i32>} : memref<8x32xf32, #tpu.memory_space<vmem>>, vector<8x8xf32>,
    %36 = vector.extract_strided_slice %6 {offsets = [0, 8], sizes = [8, 8], strides = [1, 1]} : vector<8x32xf32> to vector<8x8xf32>
    %37 = vector.extract_strided_slice %11 {offsets = [0, 8], sizes = [8, 8], strides = [1, 1]} : vector<8x32xf32> to vector<8x8xf32>
    %38 = vector.extract_strided_slice %16 {offsets = [0, 8], sizes = [8, 8], strides = [1, 1]} : vector<8x32xf32> to vector<8x8xf32>
    %cst_26 = arith.constant dense<0.000000e+00> : vector<8x8xf32>
    %39 = tpu.matmul %36, %37, %cst_26 {dimension_numbers = #tpu.dot_dimension_numbers<[1], [1], [0], [0], [0, 0, 1, 0], [], []>} : vector<8x8xf32>, vector<8x8xf32>, vector<8x8xf32> -> vector<8x8xf32>
    %c0_27 = arith.constant 0 : index
    %c1 = arith.constant 1 : index
    %c0_28 = arith.constant 0 : index
    %c0_29 = arith.constant 0 : index
    %40 = vector.load %arg2[%c0_27, %c1, %c0_28, %c0_29] : memref<1x4x8x8xf32, #tpu.memory_space<vmem>>, vector<1x1x8x8xf32>
    %41 = vector.shape_cast %40 : vector<1x1x8x8xf32> to vector<8x8xf32>
    %42 = arith.addf %39, %41 : vector<8x8xf32>
    %cst_30 = arith.constant dense<0xFF800000> : vector<8xf32>
    %43 = vector.multi_reduction <maximumf>, %42, %cst_30 [1] : vector<8x8xf32> to vector<8xf32>
    %44 = vector.shape_cast %43 : vector<8xf32> to vector<8x1xf32>
    %45 = vector.broadcast %44 : vector<8x1xf32> to vector<8x8xf32>
    %46 = arith.subf %42, %45 : vector<8x8xf32>
    %47 = math.exp %46 : vector<8x8xf32>
    %cst_31 = arith.constant dense<0.000000e+00> : vector<8xf32>
    %48 = vector.multi_reduction <add>, %47, %cst_31 [1] : vector<8x8xf32> to vector<8xf32>
    %49 = vector.shape_cast %48 : vector<8xf32> to vector<8x1xf32>
    %cst_32 = arith.constant dense<0.000000e+00> : vector<8x8xf32>
    %50 = tpu.matmul %47, %38, %cst_32 {dimension_numbers = #tpu.dot_dimension_numbers<[1], [0], [0], [1], [0, 0, 1, 1], [], []>} : vector<8x8xf32>, vector<8x8xf32>, vector<8x8xf32> -> vector<8x8xf32>
    %51 = tpu.reciprocal %49 {approx = true} : vector<8x1xf32> -> vector<8x1xf32>
    %52 = vector.broadcast %51 : vector<8x1xf32> to vector<8x8xf32>
    %53 = arith.mulf %50, %52 : vector<8x8xf32>
    %c0_33 = arith.constant 0 : index
    %c8 = arith.constant 8 : index
    %54 = vector.load %arg12[%c0_33, %c8] : memref<8x32xf32, #tpu.memory_space<vmem>>, vector<8x8xf32>
    tpu.vector_store %arg12[%c0_33, %c8], %53 {strides = array<i32>} : memref<8x32xf32, #tpu.memory_space<vmem>>, vector<8x8xf32>,
    %55 = vector.extract_strided_slice %6 {offsets = [0, 16], sizes = [8, 8], strides = [1, 1]} : vector<8x32xf32> to vector<8x8xf32>
    %56 = vector.extract_strided_slice %11 {offsets = [0, 16], sizes = [8, 8], strides = [1, 1]} : vector<8x32xf32> to vector<8x8xf32>
    %57 = vector.extract_strided_slice %16 {offsets = [0, 16], sizes = [8, 8], strides = [1, 1]} : vector<8x32xf32> to vector<8x8xf32>
    %cst_34 = arith.constant dense<0.000000e+00> : vector<8x8xf32>
    %58 = tpu.matmul %55, %56, %cst_34 {dimension_numbers = #tpu.dot_dimension_numbers<[1], [1], [0], [0], [0, 0, 1, 0], [], []>} : vector<8x8xf32>, vector<8x8xf32>, vector<8x8xf32> -> vector<8x8xf32>
    %c0_35 = arith.constant 0 : index
    %c2 = arith.constant 2 : index
    %c0_36 = arith.constant 0 : index
    %c0_37 = arith.constant 0 : index
    %59 = vector.load %arg2[%c0_35, %c2, %c0_36, %c0_37] : memref<1x4x8x8xf32, #tpu.memory_space<vmem>>, vector<1x1x8x8xf32>
    %60 = vector.shape_cast %59 : vector<1x1x8x8xf32> to vector<8x8xf32>
    %61 = arith.addf %58, %60 : vector<8x8xf32>
    %cst_38 = arith.constant dense<0xFF800000> : vector<8xf32>
    %62 = vector.multi_reduction <maximumf>, %61, %cst_38 [1] : vector<8x8xf32> to vector<8xf32>
    %63 = vector.shape_cast %62 : vector<8xf32> to vector<8x1xf32>
    %64 = vector.broadcast %63 : vector<8x1xf32> to vector<8x8xf32>
    %65 = arith.subf %61, %64 : vector<8x8xf32>
    %66 = math.exp %65 : vector<8x8xf32>
    %cst_39 = arith.constant dense<0.000000e+00> : vector<8xf32>
    %67 = vector.multi_reduction <add>, %66, %cst_39 [1] : vector<8x8xf32> to vector<8xf32>
    %68 = vector.shape_cast %67 : vector<8xf32> to vector<8x1xf32>
    %cst_40 = arith.constant dense<0.000000e+00> : vector<8x8xf32>
    %69 = tpu.matmul %66, %57, %cst_40 {dimension_numbers = #tpu.dot_dimension_numbers<[1], [0], [0], [1], [0, 0, 1, 1], [], []>} : vector<8x8xf32>, vector<8x8xf32>, vector<8x8xf32> -> vector<8x8xf32>
    %70 = tpu.reciprocal %68 {approx = true} : vector<8x1xf32> -> vector<8x1xf32>
    %71 = vector.broadcast %70 : vector<8x1xf32> to vector<8x8xf32>
    %72 = arith.mulf %69, %71 : vector<8x8xf32>
    %c0_41 = arith.constant 0 : index
    %c16 = arith.constant 16 : index
    %73 = vector.load %arg12[%c0_41, %c16] : memref<8x32xf32, #tpu.memory_space<vmem>>, vector<8x8xf32>
    tpu.vector_store %arg12[%c0_41, %c16], %72 {strides = array<i32>} : memref<8x32xf32, #tpu.memory_space<vmem>>, vector<8x8xf32>,
    %74 = vector.extract_strided_slice %6 {offsets = [0, 24], sizes = [8, 8], strides = [1, 1]} : vector<8x32xf32> to vector<8x8xf32>
    %75 = vector.extract_strided_slice %11 {offsets = [0, 24], sizes = [8, 8], strides = [1, 1]} : vector<8x32xf32> to vector<8x8xf32>
    %76 = vector.extract_strided_slice %16 {offsets = [0, 24], sizes = [8, 8], strides = [1, 1]} : vector<8x32xf32> to vector<8x8xf32>
    %cst_42 = arith.constant dense<0.000000e+00> : vector<8x8xf32>
    %77 = tpu.matmul %74, %75, %cst_42 {dimension_numbers = #tpu.dot_dimension_numbers<[1], [1], [0], [0], [0, 0, 1, 0], [], []>} : vector<8x8xf32>, vector<8x8xf32>, vector<8x8xf32> -> vector<8x8xf32>
    %c0_43 = arith.constant 0 : index
    %c3 = arith.constant 3 : index
    %c0_44 = arith.constant 0 : index
    %c0_45 = arith.constant 0 : index
    %78 = vector.load %arg2[%c0_43, %c3, %c0_44, %c0_45] : memref<1x4x8x8xf32, #tpu.memory_space<vmem>>, vector<1x1x8x8xf32>
    %79 = vector.shape_cast %78 : vector<1x1x8x8xf32> to vector<8x8xf32>
    %80 = arith.addf %77, %79 : vector<8x8xf32>
    %cst_46 = arith.constant dense<0xFF800000> : vector<8xf32>
    %81 = vector.multi_reduction <maximumf>, %80, %cst_46 [1] : vector<8x8xf32> to vector<8xf32>
    %82 = vector.shape_cast %81 : vector<8xf32> to vector<8x1xf32>
    %83 = vector.broadcast %82 : vector<8x1xf32> to vector<8x8xf32>
    %84 = arith.subf %80, %83 : vector<8x8xf32>
    %85 = math.exp %84 : vector<8x8xf32>
    %cst_47 = arith.constant dense<0.000000e+00> : vector<8xf32>
    %86 = vector.multi_reduction <add>, %85, %cst_47 [1] : vector<8x8xf32> to vector<8xf32>
    %87 = vector.shape_cast %86 : vector<8xf32> to vector<8x1xf32>
    %cst_48 = arith.constant dense<0.000000e+00> : vector<8x8xf32>
    %88 = tpu.matmul %85, %76, %cst_48 {dimension_numbers = #tpu.dot_dimension_numbers<[1], [0], [0], [1], [0, 0, 1, 1], [], []>} : vector<8x8xf32>, vector<8x8xf32>, vector<8x8xf32> -> vector<8x8xf32>
    %89 = tpu.reciprocal %87 {approx = true} : vector<8x1xf32> -> vector<8x1xf32>
    %90 = vector.broadcast %89 : vector<8x1xf32> to vector<8x8xf32>
    %91 = arith.mulf %88, %90 : vector<8x8xf32>
    %c0_49 = arith.constant 0 : index
    %c24 = arith.constant 24 : index
    %92 = vector.load %arg12[%c0_49, %c24] : memref<8x32xf32, #tpu.memory_space<vmem>>, vector<8x8xf32>
    tpu.vector_store %arg12[%c0_49, %c24], %91 {strides = array<i32>} : memref<8x32xf32, #tpu.memory_space<vmem>>, vector<8x8xf32>,
    %c0_50 = arith.constant 0 : index
    %c0_51 = arith.constant 0 : index
    %93 = vector.load %arg12[%c0_50, %c0_51] : memref<8x32xf32, #tpu.memory_space<vmem>>, vector<8x32xf32>
    %c0_52 = arith.constant 0 : index
    %c0_53 = arith.constant 0 : index
    %94 = vector.load %arg9[%c0_52, %c0_53] : memref<32x32xf32, #tpu.memory_space<vmem>>, vector<32x32xf32>
    %cst_54 = arith.constant dense<0.000000e+00> : vector<8x32xf32>
    %95 = tpu.matmul %93, %94, %cst_54 {dimension_numbers = #tpu.dot_dimension_numbers<[1], [0], [0], [1], [0, 0, 1, 1], [], []>} : vector<8x32xf32>, vector<32x32xf32>, vector<8x32xf32> -> vector<8x32xf32>
    %c0_55 = arith.constant 0 : index
    %c0_56 = arith.constant 0 : index
    %96 = vector.load %arg10[%c0_55, %c0_56] : memref<1x32xf32, #tpu.memory_space<vmem>>, vector<1x32xf32>
    %97 = vector.broadcast %96 : vector<1x32xf32> to vector<8x32xf32>
    %98 = arith.addf %95, %97 : vector<8x32xf32>
    %c0_57 = arith.constant 0 : index
    %c0_58 = arith.constant 0 : index
    %c0_59 = arith.constant 0 : index
    %99 = vector.load %arg11[%c0_57, %c0_58, %c0_59] : memref<1x8x32xf32, #tpu.memory_space<vmem>>, vector<1x8x32xf32>
    %100 = vector.shape_cast %99 : vector<1x8x32xf32> to vector<8x32xf32>
    %101 = vector.shape_cast %98 : vector<8x32xf32> to vector<1x8x32xf32>
    tpu.vector_store %arg11[%c0_57, %c0_58, %c0_59], %101 {strides = array<i32>} : memref<1x8x32xf32, #tpu.memory_space<vmem>>, vector<1x8x32xf32>,
    return
  }
  func.func @transform_0(%arg0: i32) -> (i32, i32, i32) {
    %c0_i32 = arith.constant 0 : i32
    %c0_i32_0 = arith.constant 0 : i32
    %c0_i32_1 = arith.constant 0 : i32
    return %arg0, %c0_i32, %c0_i32_0 : i32, i32, i32
  }
  func.func @transform_1(%arg0: i32) -> (i32, i32, i32, i32) {
    %c0_i32 = arith.constant 0 : i32
    %c0_i32_0 = arith.constant 0 : i32
    %c0_i32_1 = arith.constant 0 : i32
    %c0_i32_2 = arith.constant 0 : i32
    return %arg0, %c0_i32, %c0_i32_0, %c0_i32_1 : i32, i32, i32, i32
  }
  func.func @transform_2(%arg0: i32) -> (i32, i32) {
    %c0_i32 = arith.constant 0 : i32
    %c0_i32_0 = arith.constant 0 : i32
    %c0_i32_1 = arith.constant 0 : i32
    return %c0_i32, %c0_i32_0 : i32, i32
  }
  func.func @transform_3(%arg0: i32) -> (i32, i32) {
    %c0_i32 = arith.constant 0 : i32
    %c0_i32_0 = arith.constant 0 : i32
    %c0_i32_1 = arith.constant 0 : i32
    return %c0_i32, %c0_i32_0 : i32, i32
  }
  func.func @transform_4(%arg0: i32) -> (i32, i32) {
    %c0_i32 = arith.constant 0 : i32
    %c0_i32_0 = arith.constant 0 : i32
    %c0_i32_1 = arith.constant 0 : i32
    return %c0_i32, %c0_i32_0 : i32, i32
  }
  func.func @transform_5(%arg0: i32) -> (i32, i32) {
    %c0_i32 = arith.constant 0 : i32
    %c0_i32_0 = arith.constant 0 : i32
    %c0_i32_1 = arith.constant 0 : i32
    return %c0_i32, %c0_i32_0 : i32, i32
  }
  func.func @transform_6(%arg0: i32) -> (i32, i32) {
    %c0_i32 = arith.constant 0 : i32
    %c0_i32_0 = arith.constant 0 : i32
    %c0_i32_1 = arith.constant 0 : i32
    return %c0_i32, %c0_i32_0 : i32, i32
  }
  func.func @transform_7(%arg0: i32) -> (i32, i32) {
    %c0_i32 = arith.constant 0 : i32
    %c0_i32_0 = arith.constant 0 : i32
    %c0_i32_1 = arith.constant 0 : i32
    return %c0_i32, %c0_i32_0 : i32, i32
  }
  func.func @transform_8(%arg0: i32) -> (i32, i32) {
    %c0_i32 = arith.constant 0 : i32
    %c0_i32_0 = arith.constant 0 : i32
    %c0_i32_1 = arith.constant 0 : i32
    return %c0_i32, %c0_i32_0 : i32, i32
  }
  func.func @transform_9(%arg0: i32) -> (i32, i32) {
    %c0_i32 = arith.constant 0 : i32
    %c0_i32_0 = arith.constant 0 : i32
    %c0_i32_1 = arith.constant 0 : i32
    return %c0_i32, %c0_i32_0 : i32, i32
  }
  func.func @transform_10(%arg0: i32) -> (i32, i32, i32) {
    %c0_i32 = arith.constant 0 : i32
    %c0_i32_0 = arith.constant 0 : i32
    %c0_i32_1 = arith.constant 0 : i32
    return %arg0, %c0_i32, %c0_i32_0 : i32, i32, i32
  }
}

</mosaic_0001>

<llo_original>
// kernel: tpu_custom_call.1
$region0: #{tpu_custom_call.1}
  #allocation0 [shape = 'u32[]', space=smem, size = 0x4, offset = 0x4, fixed_abs, tag = 'smem constant byte address 0x4 - core index']
  #allocation1 [shape = 'u32[144,128]{1,0:T(1,128)}', space=vmem, size = 0x12000, scoped, tag = 'internal scratch']
  #allocation2 [shape = 'f32[8,32]{1,0:T(8,128)}', space=vmem, size = 0x1000, scoped, tag = 'scratch operand']
  %s0 = inlined_call_operand.hbm [shape: f32[2,8,32], index: 0, kind: input, shape index: {}]
  %s1 = inlined_call_operand.hbm [shape: f32[2,4,8,8], index: 1, kind: input, shape index: {}]
  %s2 = inlined_call_operand.hbm [shape: f32[32,32], index: 2, kind: input, shape index: {}]
  %s3 = inlined_call_operand.vmem [shape: f32[1,32], index: 3, kind: input, shape index: {}]
  %s4 = inlined_call_operand.hbm [shape: f32[32,32], index: 4, kind: input, shape index: {}]
  %s5 = inlined_call_operand.vmem [shape: f32[1,32], index: 5, kind: input, shape index: {}]
  %s6 = inlined_call_operand.hbm [shape: f32[32,32], index: 6, kind: input, shape index: {}]
  %s7 = inlined_call_operand.vmem [shape: f32[1,32], index: 7, kind: input, shape index: {}]
  %s8 = inlined_call_operand.hbm [shape: f32[32,32], index: 8, kind: input, shape index: {}]
  %s9 = inlined_call_operand.vmem [shape: f32[1,32], index: 9, kind: input, shape index: {}]
  %s10 = inlined_call_operand.hbm [shape: f32[2,8,32], index: 10, kind: output, shape index: {}]
  %s11 = sld [smem:[#allocation0]]
  $region97: #{tpu_custom_call.1} parent=0
    _
  %s13 = ssub.s32 1, %s11
  %s14 = scalar_select 0, %s13, %s11
  $region1: #{tpu_custom_call.1} parent=0
    #allocation3 [shape = 'u8[8192]{0}', space=vmem, size = 0x2000, scoped, tag = 'input window, operand 0']
    #allocation4 [shape = 's32[2]{0}', space=sflag, size = 0x8, scoped, tag = 'scoped memory for tpu_custom_call.1']
    #allocation5 [shape = 's32[2]{0}', space=sflag, size = 0x8, scoped, tag = 'scoped memory for tpu_custom_call.1']
    #allocation6 [shape = 'u8[32768]{0}', space=vmem, size = 0x8000, scoped, tag = 'input window, operand 1']
    #allocation7 [shape = 's32[2]{0}', space=sflag, size = 0x8, scoped, tag = 'scoped memory for tpu_custom_call.1']
    #allocation8 [shape = 'u8[16384]{0}', space=vmem, size = 0x4000, scoped, tag = 'input window, operand 2, single buffered']
    #allocation9 [shape = 'u8[16384]{0}', space=vmem, size = 0x4000, scoped, tag = 'input window, operand 4, single buffered']
    #allocation10 [shape = 's32[1]{0}', space=sflag, size = 0x4, scoped, tag = 'scoped memory for tpu_custom_call.1']
    #allocation11 [shape = 'u8[16384]{0}', space=vmem, size = 0x4000, scoped, tag = 'input window, operand 6, single buffered']
    #allocation12 [shape = 'u8[16384]{0}', space=vmem, size = 0x4000, scoped, tag = 'input window, operand 8, single buffered']
    #allocation13 [shape = 's32[1]{0}', space=sflag, size = 0x4, scoped, tag = 'scoped memory for tpu_custom_call.1']
    #allocation14 [shape = 'u8[8192]{0}', space=vmem, size = 0x2000, scoped, tag = 'output window, operand 0']
    %15 = vsyncpa [#allocation4], 0
    %s16 = scalar_lea.sflag [#allocation4], 1
    %17 = vsyncpa %s16, 0
    %18 = vsyncpa [#allocation7], 0
    %s19 = scalar_lea.sflag [#allocation7], 1
    %20 = vsyncpa %s19, 0
    %21 = vsyncpa [#allocation10], 0
    %22 = vsyncpa [#allocation13], 0
    %23 = vsyncpa [#allocation5], 0
    %s24 = scalar_lea.sflag [#allocation5], 1
    %25 = vsyncpa %s24, 0
    loop: start=0, step=1, limit=4
    $region2: #{tpu_custom_call.1} parent=1 // loop_pre_header
      _
    $region3: #{tpu_custom_call.1} parent=1 // loop_header
      %s27 = sphi 0, %s31
      %p28 = scmp.ge.s32.totalorder %s27, 4
      %s37 = sphi 0, %s39
      %s40 = sphi 0, %s37
      %s41 = sphi 0, %s40
      %s57 = sphi 0, %s41
      %s63 = sphi 0, %s65
      %s66 = sphi 0, %s63
      %s67 = sphi 0, %s66
      %s83 = sphi 0, %s67
      %s87 = sphi 0, %s87
      %s89 = sphi 0, %s87
      %s90 = sphi 0, %s89
      %s104 = sphi 0, %s90
      %s108 = sphi 0, %s108
      %s110 = sphi 0, %s108
      %s111 = sphi 0, %s110
      %s125 = sphi 0, %s111
      %s129 = sphi 0, %s129
      %s131 = sphi 0, %s129
      %s132 = sphi 0, %s131
      %s146 = sphi 0, %s132
      %s150 = sphi 0, %s150
      %s152 = sphi 0, %s150
      %s153 = sphi 0, %s152
      %s167 = sphi 0, %s153
      %s171 = sphi 0, %s171
      %s173 = sphi 0, %s171
      %s174 = sphi 0, %s173
      %s188 = sphi 0, %s174
      %s192 = sphi 0, %s192
      %s194 = sphi 0, %s192
      %s195 = sphi 0, %s194
      %s209 = sphi 0, %s195
      %s213 = sphi 0, %s213
      %s215 = sphi 0, %s213
      %s216 = sphi 0, %s215
      %s230 = sphi 0, %s216
      %s234 = sphi 0, %s234
      %s236 = sphi 0, %s234
      %s237 = sphi 0, %s236
      %s251 = sphi 0, %s237
      %s257 = sphi 0, %s259
      %s260 = sphi 0, %s257
      %s261 = sphi 0, %s260
      %s277 = sphi 0, %s261
    $region4: #{tpu_custom_call.1} parent=1 // loop_header_branch
      %30 = sbr.rel (%p28) target = $region8
    $region5: #{tpu_custom_call.1} parent=1 // loop_body
      %s32 = ssub.s32 %s27, 1
      %s33 = ssub.s32 %s27, 2
      %s34 = sadd.s32 %s27, 1
      %s35 = ssub.s32 %s27, %s34
      %p36 = scmp.eq.s32.totalorder %s35, 0
      %s38 = sadd.s32 %s37, 1
      %s39 = scalar_select %p36, %s37, %s38
      %p42 = pneg %p36
      %p43 = scmp.eq.s32.totalorder %s27, 1
      %p44 = por %p42, %p43
      %p45 = scmp.ne.s32.totalorder %s37, %s40
      %p46 = scmp.eq.s32.totalorder %s27, 0
      %p47 = por %p45, %p46
      %p48 = scmp.ne.s32.totalorder %s37, %s40
      %p49 = scmp.eq.s32.totalorder %s32, 1
      %p50 = por %p48, %p49
      %p51 = scmp.ne.s32.totalorder %s40, %s41
      %p52 = scmp.eq.s32.totalorder %s32, 0
      %p53 = por %p51, %p52
      %p54 = scmp.ne.s32.totalorder %s40, %s41
      %p55 = scmp.eq.s32.totalorder %s33, 1
      %p56 = por %p54, %p55
      %p58 = scmp.ne.s32.totalorder %s41, %s57
      %p59 = scmp.eq.s32.totalorder %s33, 0
      %p60 = por %p58, %p59
      %s61 = ssub.s32 %s27, %s34
      %p62 = scmp.eq.s32.totalorder %s61, 0
      %s64 = sadd.s32 %s63, 1
      %s65 = scalar_select %p62, %s63, %s64
      %p68 = pneg %p62
      %p69 = scmp.eq.s32.totalorder %s27, 1
      %p70 = por %p68, %p69
      %p71 = scmp.ne.s32.totalorder %s63, %s66
      %p72 = scmp.eq.s32.totalorder %s27, 0
      %p73 = por %p71, %p72
      %p74 = scmp.ne.s32.totalorder %s63, %s66
      %p75 = scmp.eq.s32.totalorder %s32, 1
      %p76 = por %p74, %p75
      %p77 = scmp.ne.s32.totalorder %s66, %s67
      %p78 = scmp.eq.s32.totalorder %s32, 0
      %p79 = por %p77, %p78
      %p80 = scmp.ne.s32.totalorder %s66, %s67
      %p81 = scmp.eq.s32.totalorder %s33, 1
      %p82 = por %p80, %p81
      %p84 = scmp.ne.s32.totalorder %s67, %s83
      %p85 = scmp.eq.s32.totalorder %s33, 0
      %p86 = por %p84, %p85
      %s88 = sadd.s32 %s87, 1
      %p91 = scmp.eq.s32.totalorder %s27, 1
      %p92 = scmp.ne.s32.totalorder %s87, %s89
      %p93 = scmp.eq.s32.totalorder %s27, 0
      %p94 = por %p92, %p93
      %p95 = scmp.ne.s32.totalorder %s87, %s89
      %p96 = scmp.eq.s32.totalorder %s32, 1
      %p97 = por %p95, %p96
      %p98 = scmp.ne.s32.totalorder %s89, %s90
      %p99 = scmp.eq.s32.totalorder %s32, 0
      %p100 = por %p98, %p99
      %p101 = scmp.ne.s32.totalorder %s89, %s90
      %p102 = scmp.eq.s32.totalorder %s33, 1
      %p103 = por %p101, %p102
      %p105 = scmp.ne.s32.totalorder %s90, %s104
      %p106 = scmp.eq.s32.totalorder %s33, 0
      %p107 = por %p105, %p106
      %s109 = sadd.s32 %s108, 1
      %p112 = scmp.eq.s32.totalorder %s27, 1
      %p113 = scmp.ne.s32.totalorder %s108, %s110
      %p114 = scmp.eq.s32.totalorder %s27, 0
      %p115 = por %p113, %p114
      %p116 = scmp.ne.s32.totalorder %s108, %s110
      %p117 = scmp.eq.s32.totalorder %s32, 1
      %p118 = por %p116, %p117
      %p119 = scmp.ne.s32.totalorder %s110, %s111
      %p120 = scmp.eq.s32.totalorder %s32, 0
      %p121 = por %p119, %p120
      %p122 = scmp.ne.s32.totalorder %s110, %s111
      %p123 = scmp.eq.s32.totalorder %s33, 1
      %p124 = por %p122, %p123
      %p126 = scmp.ne.s32.totalorder %s111, %s125
      %p127 = scmp.eq.s32.totalorder %s33, 0
      %p128 = por %p126, %p127
      %s130 = sadd.s32 %s129, 1
      %p133 = scmp.eq.s32.totalorder %s27, 1
      %p134 = scmp.ne.s32.totalorder %s129, %s131
      %p135 = scmp.eq.s32.totalorder %s27, 0
      %p136 = por %p134, %p135
      %p137 = scmp.ne.s32.totalorder %s129, %s131
      %p138 = scmp.eq.s32.totalorder %s32, 1
      %p139 = por %p137, %p138
      %p140 = scmp.ne.s32.totalorder %s131, %s132
      %p141 = scmp.eq.s32.totalorder %s32, 0
      %p142 = por %p140, %p141
      %p143 = scmp.ne.s32.totalorder %s131, %s132
      %p144 = scmp.eq.s32.totalorder %s33, 1
      %p145 = por %p143, %p144
      %p147 = scmp.ne.s32.totalorder %s132, %s146
      %p148 = scmp.eq.s32.totalorder %s33, 0
      %p149 = por %p147, %p148
      %s151 = sadd.s32 %s150, 1
      %p154 = scmp.eq.s32.totalorder %s27, 1
      %p155 = scmp.ne.s32.totalorder %s150, %s152
      %p156 = scmp.eq.s32.totalorder %s27, 0
      %p157 = por %p155, %p156
      %p158 = scmp.ne.s32.totalorder %s150, %s152
      %p159 = scmp.eq.s32.totalorder %s32, 1
      %p160 = por %p158, %p159
      %p161 = scmp.ne.s32.totalorder %s152, %s153
      %p162 = scmp.eq.s32.totalorder %s32, 0
      %p163 = por %p161, %p162
      %p164 = scmp.ne.s32.totalorder %s152, %s153
      %p165 = scmp.eq.s32.totalorder %s33, 1
      %p166 = por %p164, %p165
      %p168 = scmp.ne.s32.totalorder %s153, %s167
      %p169 = scmp.eq.s32.totalorder %s33, 0
      %p170 = por %p168, %p169
      %s172 = sadd.s32 %s171, 1
      %p175 = scmp.eq.s32.totalorder %s27, 1
      %p176 = scmp.ne.s32.totalorder %s171, %s173
      %p177 = scmp.eq.s32.totalorder %s27, 0
      %p178 = por %p176, %p177
      %p179 = scmp.ne.s32.totalorder %s171, %s173
      %p180 = scmp.eq.s32.totalorder %s32, 1
      %p181 = por %p179, %p180
      %p182 = scmp.ne.s32.totalorder %s173, %s174
      %p183 = scmp.eq.s32.totalorder %s32, 0
      %p184 = por %p182, %p183
      %p185 = scmp.ne.s32.totalorder %s173, %s174
      %p186 = scmp.eq.s32.totalorder %s33, 1
      %p187 = por %p185, %p186
      %p189 = scmp.ne.s32.totalorder %s174, %s188
      %p190 = scmp.eq.s32.totalorder %s33, 0
      %p191 = por %p189, %p190
      %s193 = sadd.s32 %s192, 1
      %p196 = scmp.eq.s32.totalorder %s27, 1
      %p197 = scmp.ne.s32.totalorder %s192, %s194
      %p198 = scmp.eq.s32.totalorder %s27, 0
      %p199 = por %p197, %p198
      %p200 = scmp.ne.s32.totalorder %s192, %s194
      %p201 = scmp.eq.s32.totalorder %s32, 1
      %p202 = por %p200, %p201
      %p203 = scmp.ne.s32.totalorder %s194, %s195
      %p204 = scmp.eq.s32.totalorder %s32, 0
      %p205 = por %p203, %p204
      %p206 = scmp.ne.s32.totalorder %s194, %s195
      %p207 = scmp.eq.s32.totalorder %s33, 1
      %p208 = por %p206, %p207
      %p210 = scmp.ne.s32.totalorder %s195, %s209
      %p211 = scmp.eq.s32.totalorder %s33, 0
      %p212 = por %p210, %p211
      %s214 = sadd.s32 %s213, 1
      %p217 = scmp.eq.s32.totalorder %s27, 1
      %p218 = scmp.ne.s32.totalorder %s213, %s215
      %p219 = scmp.eq.s32.totalorder %s27, 0
      %p220 = por %p218, %p219
      %p221 = scmp.ne.s32.totalorder %s213, %s215
      %p222 = scmp.eq.s32.totalorder %s32, 1
      %p223 = por %p221, %p222
      %p224 = scmp.ne.s32.totalorder %s215, %s216
      %p225 = scmp.eq.s32.totalorder %s32, 0
      %p226 = por %p224, %p225
      %p227 = scmp.ne.s32.totalorder %s215, %s216
      %p228 = scmp.eq.s32.totalorder %s33, 1
      %p229 = por %p227, %p228
      %p231 = scmp.ne.s32.totalorder %s216, %s230
      %p232 = scmp.eq.s32.totalorder %s33, 0
      %p233 = por %p231, %p232
      %s235 = sadd.s32 %s234, 1
      %p238 = scmp.eq.s32.totalorder %s27, 1
      %p239 = scmp.ne.s32.totalorder %s234, %s236
      %p240 = scmp.eq.s32.totalorder %s27, 0
      %p241 = por %p239, %p240
      %p242 = scmp.ne.s32.totalorder %s234, %s236
      %p243 = scmp.eq.s32.totalorder %s32, 1
      %p244 = por %p242, %p243
      %p245 = scmp.ne.s32.totalorder %s236, %s237
      %p246 = scmp.eq.s32.totalorder %s32, 0
      %p247 = por %p245, %p246
      %p248 = scmp.ne.s32.totalorder %s236, %s237
      %p249 = scmp.eq.s32.totalorder %s33, 1
      %p250 = por %p248, %p249
      %p252 = scmp.ne.s32.totalorder %s237, %s251
      %p253 = scmp.eq.s32.totalorder %s33, 0
      %p254 = por %p252, %p253
      %s255 = ssub.s32 %s27, %s34
      %p256 = scmp.eq.s32.totalorder %s255, 0
      %s258 = sadd.s32 %s257, 1
      %s259 = scalar_select %p256, %s257, %s258
      %p262 = pneg %p256
      %p263 = scmp.eq.s32.totalorder %s27, 1
      %p264 = por %p262, %p263
      %p265 = scmp.ne.s32.totalorder %s257, %s260
      %p266 = scmp.eq.s32.totalorder %s27, 0
      %p267 = por %p265, %p266
      %p268 = scmp.ne.s32.totalorder %s257, %s260
      %p269 = scmp.eq.s32.totalorder %s32, 1
      %p270 = por %p268, %p269
      %p271 = scmp.ne.s32.totalorder %s260, %s261
      %p272 = scmp.eq.s32.totalorder %s32, 0
      %p273 = por %p271, %p272
      %p274 = scmp.ne.s32.totalorder %s260, %s261
      %p275 = scmp.eq.s32.totalorder %s33, 1
      %p276 = por %p274, %p275
      %p278 = scmp.ne.s32.totalorder %s261, %s277
      %p279 = scmp.eq.s32.totalorder %s33, 0
      %p280 = por %p278, %p279
      %p281 = scmp.le.s32.totalorder 1, %s27
      %p282 = scmp.lt.s32.totalorder %s27, 3
      %p283 = pnand %p281, %p282
      %p284 = pneg %p283
      // Predicated region
      $region9: #{tpu_custom_call.1} parent=5 // pred_check
        _
      $region10: #{tpu_custom_call.1} parent=5 // pred_check_branch
        %286 = sbr.rel (%p283) target = $region12
      $region11: #{tpu_custom_call.1} parent=5 // pred_region
        %s287 = ssub.s32 %s27, 1
        // Predicated region
        $region13: #{tpu_custom_call.1} parent=11 // pred_check
          %p288 = pneg %p100
        $region14: #{tpu_custom_call.1} parent=11 // pred_check_branch
          %290 = sbr.rel (%p288) target = $region16
        $region15: #{tpu_custom_call.1} parent=11 // pred_region
          %s292 = ssub.s32 512, 512
          %293 = vsyncadd [#allocation7], %s292
          %s294 = sshll.u32 [#allocation8], 4
          %s295 = int_to_ptr.vmem [resolvable:$true] %s294
          %300 = dma.hbm_to_vmem [thread:$0]  %s2, 512, %s295, [#allocation7], 128, 128, 8
        $region16: #{tpu_custom_call.1} parent=11 // pred_fallthru
          _
        // Predicated region
        $region17: #{tpu_custom_call.1} parent=11 // pred_check
          %p301 = pneg %p121
        $region18: #{tpu_custom_call.1} parent=11 // pred_check_branch
          %303 = sbr.rel (%p301) target = $region20
        $region19: #{tpu_custom_call.1} parent=11 // pred_region
          _
        $region20: #{tpu_custom_call.1} parent=11 // pred_fallthru
          _
        // Predicated region
        $region21: #{tpu_custom_call.1} parent=11 // pred_check
          %p304 = pneg %p142
        $region22: #{tpu_custom_call.1} parent=11 // pred_check_branch
          %306 = sbr.rel (%p304) target = $region24
        $region23: #{tpu_custom_call.1} parent=11 // pred_region
          %s308 = ssub.s32 512, 512
          %309 = vsyncadd [#allocation10], %s308
          %s310 = sshll.u32 [#allocation9], 4
          %s311 = int_to_ptr.vmem [resolvable:$true] %s310
          %316 = dma.hbm_to_vmem [thread:$0]  %s4, 512, %s311, [#allocation10], 128, 128, 8
        $region24: #{tpu_custom_call.1} parent=11 // pred_fallthru
          _
        // Predicated region
        $region25: #{tpu_custom_call.1} parent=11 // pred_check
          %p317 = pneg %p163
        $region26: #{tpu_custom_call.1} parent=11 // pred_check_branch
          %319 = sbr.rel (%p317) target = $region28
        $region27: #{tpu_custom_call.1} parent=11 // pred_region
          _
        $region28: #{tpu_custom_call.1} parent=11 // pred_fallthru
          _
        // Predicated region
        $region29: #{tpu_custom_call.1} parent=11 // pred_check
          %p320 = pneg %p184
        $region30: #{tpu_custom_call.1} parent=11 // pred_check_branch
          %322 = sbr.rel (%p320) target = $region32
        $region31: #{tpu_custom_call.1} parent=11 // pred_region
          %s324 = ssub.s32 512, 512
          %325 = vsyncadd [#allocation10], %s324
          %s326 = sshll.u32 [#allocation11], 4
          %s327 = int_to_ptr.vmem [resolvable:$true] %s326
          %332 = dma.hbm_to_vmem [thread:$0]  %s6, 512, %s327, [#allocation10], 128, 128, 8
        $region32: #{tpu_custom_call.1} parent=11 // pred_fallthru
          _
        // Predicated region
        $region33: #{tpu_custom_call.1} parent=11 // pred_check
          %p333 = pneg %p205
        $region34: #{tpu_custom_call.1} parent=11 // pred_check_branch
          %335 = sbr.rel (%p333) target = $region36
        $region35: #{tpu_custom_call.1} parent=11 // pred_region
          _
        $region36: #{tpu_custom_call.1} parent=11 // pred_fallthru
          _
        // Predicated region
        $region37: #{tpu_custom_call.1} parent=11 // pred_check
          %p336 = pneg %p226
        $region38: #{tpu_custom_call.1} parent=11 // pred_check_branch
          %338 = sbr.rel (%p336) target = $region40
        $region39: #{tpu_custom_call.1} parent=11 // pred_region
          %s340 = ssub.s32 512, 512
          %341 = vsyncadd [#allocation13], %s340
          %s342 = sshll.u32 [#allocation12], 4
          %s343 = int_to_ptr.vmem [resolvable:$true] %s342
          %348 = dma.hbm_to_vmem [thread:$0]  %s8, 512, %s343, [#allocation13], 128, 128, 8
        $region40: #{tpu_custom_call.1} parent=11 // pred_fallthru
          _
        // Predicated region
        $region41: #{tpu_custom_call.1} parent=11 // pred_check
          %p349 = pneg %p247
        $region42: #{tpu_custom_call.1} parent=11 // pred_check_branch
          %351 = sbr.rel (%p349) target = $region44
        $region43: #{tpu_custom_call.1} parent=11 // pred_region
          _
        $region44: #{tpu_custom_call.1} parent=11 // pred_fallthru
          _
      $region12: #{tpu_custom_call.1} parent=5 // pred_fallthru
        _
      %p352 = scmp.lt.s32.totalorder %s27, 2
      // Predicated region
      $region45: #{tpu_custom_call.1} parent=5 // pred_check
        %p353 = pneg %p352
      $region46: #{tpu_custom_call.1} parent=5 // pred_check_branch
        %355 = sbr.rel (%p353) target = $region48
      $region47: #{tpu_custom_call.1} parent=5 // pred_region
        // Predicated region
        $region49: #{tpu_custom_call.1} parent=47 // pred_check
          %p356 = pneg %p47
        $region50: #{tpu_custom_call.1} parent=47 // pred_check_branch
          %358 = sbr.rel (%p356) target = $region52
        $region51: #{tpu_custom_call.1} parent=47 // pred_region
          %s359 = sand.u32 %s37, 1
          %s360 = scalar_lea.sflag [#allocation4], %s359
          %s361 = sand.u32 %s37, 1
          %s362 = smul.addr %s361, 8
          %s363 = scalar_lea.vmem [#allocation3], %s362
          %s365 = ssub.s32 128, 128
          %366 = vsyncadd %s360, %s365
          %s367 = smul.addr %s27, 128
          %s368 = scalar_lea.hbm %s0, %s367
          %s370 = sshll.u32 %s363, 4
          %s371 = int_to_ptr.vmem [resolvable:$true] %s370
          %373 = dma.hbm_to_vmem [thread:$0]  %s368, 128, %s371, %s360
        $region52: #{tpu_custom_call.1} parent=47 // pred_fallthru
          _
        // Predicated region
        $region53: #{tpu_custom_call.1} parent=47 // pred_check
          %p374 = pneg %p73
        $region54: #{tpu_custom_call.1} parent=47 // pred_check_branch
          %376 = sbr.rel (%p374) target = $region56
        $region55: #{tpu_custom_call.1} parent=47 // pred_region
          %s377 = sand.u32 %s27, 1
          %s378 = scalar_lea.sflag [#allocation7], %s377
          %s379 = sand.u32 %s63, 1
          %s380 = smul.addr %s379, 32
          %s381 = scalar_lea.vmem [#allocation6], %s380
          %s383 = ssub.s32 512, 512
          %384 = vsyncadd %s378, %s383
          %s385 = smul.addr %s27, 4
          %s386 = smul.addr %s385, 128
          %s387 = scalar_lea.hbm %s1, %s386
          %s388 = sshll.u32 %s381, 4
          %s389 = int_to_ptr.vmem [resolvable:$true] %s388
          %394 = dma.hbm_to_vmem [thread:$0]  %s387, 512, %s389, %s378, 128, 128, 8
        $region56: #{tpu_custom_call.1} parent=47 // pred_fallthru
          _
      $region48: #{tpu_custom_call.1} parent=5 // pred_fallthru
        _
      %p395 = scmp.le.s32.totalorder 1, %s27
      %p396 = scmp.lt.s32.totalorder %s27, 3
      %p397 = pnand %p395, %p396
      %p398 = pneg %p397
      // Predicated region
      $region57: #{tpu_custom_call.1} parent=5 // pred_check
        _
      $region58: #{tpu_custom_call.1} parent=5 // pred_check_branch
        %400 = sbr.rel (%p397) target = $region60
      $region59: #{tpu_custom_call.1} parent=5 // pred_region
        %s401 = ssub.s32 %s27, 1
        %s402 = sand.u32 %s40, 1
        %s403 = scalar_lea.sflag [#allocation4], %s402
        %s404 = sand.u32 %s40, 1
        %s405 = smul.addr %s404, 8
        %s406 = scalar_lea.vmem [#allocation3], %s405
        // Predicated region
        $region61: #{tpu_custom_call.1} parent=59 // pred_check
          %p407 = pneg %p53
        $region62: #{tpu_custom_call.1} parent=59 // pred_check_branch
          %409 = sbr.rel (%p407) target = $region64
        $region63: #{tpu_custom_call.1} parent=59 // pred_region
          %410 = dma.done %s403, 128
        $region64: #{tpu_custom_call.1} parent=59 // pred_fallthru
          _
        %s411 = sand.u32 %s32, 1
        %s412 = scalar_lea.sflag [#allocation7], %s411
        %s413 = sand.u32 %s66, 1
        %s414 = smul.addr %s413, 32
        %s415 = scalar_lea.vmem [#allocation6], %s414
        // Predicated region
        $region65: #{tpu_custom_call.1} parent=59 // pred_check
          %p416 = pneg %p79
        $region66: #{tpu_custom_call.1} parent=59 // pred_check_branch
          %418 = sbr.rel (%p416) target = $region68
        $region67: #{tpu_custom_call.1} parent=59 // pred_region
          %419 = dma.done %s412, 512
        $region68: #{tpu_custom_call.1} parent=59 // pred_fallthru
          _
        // Predicated region
        $region69: #{tpu_custom_call.1} parent=59 // pred_check
          %p420 = pneg %p100
        $region70: #{tpu_custom_call.1} parent=59 // pred_check_branch
          %422 = sbr.rel (%p420) target = $region72
        $region71: #{tpu_custom_call.1} parent=59 // pred_region
          %423 = dma.done [#allocation7], 512
        $region72: #{tpu_custom_call.1} parent=59 // pred_fallthru
          _
        // Predicated region
        $region73: #{tpu_custom_call.1} parent=59 // pred_check
          %p424 = pneg %p142
        $region74: #{tpu_custom_call.1} parent=59 // pred_check_branch
          %426 = sbr.rel (%p424) target = $region76
        $region75: #{tpu_custom_call.1} parent=59 // pred_region
          %427 = dma.done [#allocation10], 512
        $region76: #{tpu_custom_call.1} parent=59 // pred_fallthru
          _
        // Predicated region
        $region77: #{tpu_custom_call.1} parent=59 // pred_check
          %p428 = pneg %p184
        $region78: #{tpu_custom_call.1} parent=59 // pred_check_branch
          %430 = sbr.rel (%p428) target = $region80
        $region79: #{tpu_custom_call.1} parent=59 // pred_region
          %431 = dma.done [#allocation10], 512
        $region80: #{tpu_custom_call.1} parent=59 // pred_fallthru
          _
        // Predicated region
        $region81: #{tpu_custom_call.1} parent=59 // pred_check
          %p432 = pneg %p226
        $region82: #{tpu_custom_call.1} parent=59 // pred_check_branch
          %434 = sbr.rel (%p432) target = $region84
        $region83: #{tpu_custom_call.1} parent=59 // pred_region
          %435 = dma.done [#allocation13], 512
        $region84: #{tpu_custom_call.1} parent=59 // pred_fallthru
          _
        %s436 = sand.u32 %s40, 1
        %s437 = scalar_lea.sflag [#allocation4], %s436
        %s438 = sand.u32 %s40, 1
        %s439 = smul.addr %s438, 8
        %s440 = scalar_lea.vmem [#allocation3], %s439
        %p441 = pneg %p53
        %p442 = pneg %p50
        %s443 = sand.u32 %s32, 1
        %s444 = scalar_lea.sflag [#allocation7], %s443
        %s445 = sand.u32 %s66, 1
        %s446 = smul.addr %s445, 32
        %s447 = scalar_lea.vmem [#allocation6], %s446
        %p448 = pneg %p79
        %p449 = pneg %p76
        %p450 = pneg %p100
        %p451 = pneg %p97
        %p452 = pneg %p121
        %p453 = pneg %p118
        %p454 = pneg %p142
        %p455 = pneg %p139
        %p456 = pneg %p163
        %p457 = pneg %p160
        %p458 = pneg %p184
        %p459 = pneg %p181
        %p460 = pneg %p205
        %p461 = pneg %p202
        %p462 = pneg %p226
        %p463 = pneg %p223
        %p464 = pneg %p247
        %p465 = pneg %p244
        %p466 = pneg %p273
        %p467 = pneg %p270
        %s468 = sand.u32 %s260, 1
        %s469 = scalar_lea.sflag [#allocation5], %s468
        %s470 = sand.u32 %s260, 1
        %s471 = smul.addr %s470, 8
        %s472 = scalar_lea.vmem [#allocation14], %s471
        %v473 = vld [vmem:[%s406] sm:$0xff]
        %v474 = vld [vmem:[#allocation8] sm:$0xff]
        %v475 = vld [vmem:[#allocation8 + $0x8] sm:$0xff]
        %v476 = vld [vmem:[#allocation8 + $0x10] sm:$0xff]
        %v477 = vld [vmem:[#allocation8 + $0x18] sm:$0xff]
        %v478 = vld [vmem:[%s3] sm:$0x1]
        %v480 = vlaneseq
        %v481 = vshrl.u32 %v480, 7
        %v482 = vsub.s32 0, %v481
        %v483 = vrot.slane %v478, %v482
        %vm485 = vcmask 261120
        %v487 = vsel %vm485, %v473, 0
        %489 = vmatprep.subr.mxu0 0.0
        %490 = vmatpush1.msra.mxu0 %v474
        %491 = vmatprep.subr.mxu0 0.0
        %492 = vmatpush1.msra.mxu0 %v475
        %493 = vmatprep.subr.mxu0 0.0
        %494 = vmatpush1.msra.mxu0 %v476
        %495 = vmatprep.subr.mxu0 0.0
        %496 = vmatpush1.msra.mxu0 %v477
        %497 = vmatprep.subr.mxu0 0.0
        %498 = vmatpush1.msra.mxu0 0.0
        %499 = vmatprep.subr.mxu0 0.0
        %500 = vmatpush1.msra.mxu0 0.0
        %501 = vmatprep.subr.mxu0 0.0
        %502 = vmatpush1.msra.mxu0 0.0
        %503 = vmatprep.subr.mxu0 0.0
        %504 = vmatpush1.msra.mxu0 0.0
        %505 = vmatprep.subr.mxu0 0.0
        %506 = vmatpush1.msra.mxu0 0.0
        %507 = vmatprep.subr.mxu0 0.0
        %508 = vmatpush1.msra.mxu0 0.0
        %509 = vmatprep.subr.mxu0 0.0
        %510 = vmatpush1.msra.mxu0 0.0
        %511 = vmatprep.subr.mxu0 0.0
        %512 = vmatpush1.msra.mxu0 0.0
        %513 = vmatprep.subr.mxu0 0.0
        %514 = vmatpush1.msra.mxu0 0.0
        %515 = vmatprep.subr.mxu0 0.0
        %516 = vmatpush1.msra.mxu0 0.0
        %517 = vmatprep.subr.mxu0 0.0
        %518 = vmatpush1.msra.mxu0 0.0
        %519 = vmatprep.subr.mxu0 0.0
        %520 = vmatpush1.msra.mxu0 0.0
        %521 = vmatprep.subr.mxu0 0.0
        %522 = vmatpush1.msra.mxu0 0.0
        %523 = vmatprep.subr.mxu0 0.0
        %524 = vmatpush1.msra.mxu0 0.0
        %525 = vmatprep.subr.mxu0 0.0
        %526 = vmatpush1.msra.mxu0 0.0
        %527 = vmatprep.subr.mxu0 0.0
        %528 = vmatpush1.msra.mxu0 0.0
        %529 = vmatprep.subr.mxu0 0.0
        %530 = vmatpush1.msra.mxu0 0.0
        %531 = vmatprep.subr.mxu0 0.0
        %532 = vmatpush1.msra.mxu0 0.0
        %533 = vmatprep.subr.mxu0 0.0
        %534 = vmatpush1.msra.mxu0 0.0
        %535 = vmatprep.subr.mxu0 0.0
        %536 = vmatpush1.msra.mxu0 0.0
        %537 = vmatprep.subr.mxu0 0.0
        %538 = vmatpush1.msra.mxu0 0.0
        %539 = vmatprep.subr.mxu0 0.0
        %540 = vmatpush1.msra.mxu0 0.0
        %541 = vmatprep.subr.mxu0 0.0
        %542 = vmatpush1.msra.mxu0 0.0
        %543 = vmatprep.subr.mxu0 0.0
        %544 = vmatpush1.msra.mxu0 0.0
        %545 = vmatprep.subr.mxu0 0.0
        %546 = vmatpush1.msra.mxu0 0.0
        %547 = vmatprep.subr.mxu0 0.0
        %548 = vmatpush1.msra.mxu0 0.0
        %549 = vmatprep.subr.mxu0 0.0
        %550 = vmatpush1.msra.mxu0 0.0
        %551 = vmatprep.subr.mxu0 0.0
        %552 = vmatpush1.msra.mxu0 0.0
        %553 = vmatprep.mubr.f32.mxu0 0.0
        %554 = vmatmul.mubr.f32.gmra.mrb[0].mxu0 %v487
        %v555 = vpop.f32.mrb[0].mxu0
        %v556 = vadd.f32 %v483, %v555
        %v557 = vpop.f32.mrb[0].mxu0
        %558 = vdwg.mxu0
        %v559 = vld [vmem:[#allocation9] sm:$0xff]
        %v560 = vld [vmem:[#allocation9 + $0x8] sm:$0xff]
        %v561 = vld [vmem:[#allocation9 + $0x10] sm:$0xff]
        %v562 = vld [vmem:[#allocation9 + $0x18] sm:$0xff]
        %v563 = vld [vmem:[%s5] sm:$0x1]
        %v565 = vlaneseq
        %v566 = vshrl.u32 %v565, 7
        %v567 = vsub.s32 0, %v566
        %v568 = vrot.slane %v563, %v567
        %570 = vmatprep.subr.mxu0 0.0
        %571 = vmatpush1.msra.mxu0 %v559
        %572 = vmatprep.subr.mxu0 0.0
        %573 = vmatpush1.msra.mxu0 %v560
        %574 = vmatprep.subr.mxu0 0.0
        %575 = vmatpush1.msra.mxu0 %v561
        %576 = vmatprep.subr.mxu0 0.0
        %577 = vmatpush1.msra.mxu0 %v562
        %578 = vmatprep.subr.mxu0 0.0
        %579 = vmatpush1.msra.mxu0 0.0
        %580 = vmatprep.subr.mxu0 0.0
        %581 = vmatpush1.msra.mxu0 0.0
        %582 = vmatprep.subr.mxu0 0.0
        %583 = vmatpush1.msra.mxu0 0.0
        %584 = vmatprep.subr.mxu0 0.0
        %585 = vmatpush1.msra.mxu0 0.0
        %586 = vmatprep.subr.mxu0 0.0
        %587 = vmatpush1.msra.mxu0 0.0
        %588 = vmatprep.subr.mxu0 0.0
        %589 = vmatpush1.msra.mxu0 0.0
        %590 = vmatprep.subr.mxu0 0.0
        %591 = vmatpush1.msra.mxu0 0.0
        %592 = vmatprep.subr.mxu0 0.0
        %593 = vmatpush1.msra.mxu0 0.0
        %594 = vmatprep.subr.mxu0 0.0
        %595 = vmatpush1.msra.mxu0 0.0
        %596 = vmatprep.subr.mxu0 0.0
        %597 = vmatpush1.msra.mxu0 0.0
        %598 = vmatprep.subr.mxu0 0.0
        %599 = vmatpush1.msra.mxu0 0.0
        %600 = vmatprep.subr.mxu0 0.0
        %601 = vmatpush1.msra.mxu0 0.0
        %602 = vmatprep.subr.mxu0 0.0
        %603 = vmatpush1.msra.mxu0 0.0
        %604 = vmatprep.subr.mxu0 0.0
        %605 = vmatpush1.msra.mxu0 0.0
        %606 = vmatprep.subr.mxu0 0.0
        %607 = vmatpush1.msra.mxu0 0.0
        %608 = vmatprep.subr.mxu0 0.0
        %609 = vmatpush1.msra.mxu0 0.0
        %610 = vmatprep.subr.mxu0 0.0
        %611 = vmatpush1.msra.mxu0 0.0
        %612 = vmatprep.subr.mxu0 0.0
        %613 = vmatpush1.msra.mxu0 0.0
        %614 = vmatprep.subr.mxu0 0.0
        %615 = vmatpush1.msra.mxu0 0.0
        %616 = vmatprep.subr.mxu0 0.0
        %617 = vmatpush1.msra.mxu0 0.0
        %618 = vmatprep.subr.mxu0 0.0
        %619 = vmatpush1.msra.mxu0 0.0
        %620 = vmatprep.subr.mxu0 0.0
        %621 = vmatpush1.msra.mxu0 0.0
        %622 = vmatprep.subr.mxu0 0.0
        %623 = vmatpush1.msra.mxu0 0.0
        %624 = vmatprep.subr.mxu0 0.0
        %625 = vmatpush1.msra.mxu0 0.0
        %626 = vmatprep.subr.mxu0 0.0
        %627 = vmatpush1.msra.mxu0 0.0
        %628 = vmatprep.subr.mxu0 0.0
        %629 = vmatpush1.msra.mxu0 0.0
        %630 = vmatprep.subr.mxu0 0.0
        %631 = vmatpush1.msra.mxu0 0.0
        %632 = vmatprep.subr.mxu0 0.0
        %633 = vmatpush1.msra.mxu0 0.0
        %634 = vmatprep.mubr.f32.mxu0 0.0
        %635 = vmatmul.mubr.f32.gmra.mrb[0].mxu0 %v487
        %v636 = vpop.f32.mrb[0].mxu0
        %v637 = vadd.f32 %v568, %v636
        %v638 = vpop.f32.mrb[0].mxu0
        %639 = vdwg.mxu0
        %v640 = vld [vmem:[#allocation11] sm:$0xff]
        %v641 = vld [vmem:[#allocation11 + $0x8] sm:$0xff]
        %v642 = vld [vmem:[#allocation11 + $0x10] sm:$0xff]
        %v643 = vld [vmem:[#allocation11 + $0x18] sm:$0xff]
        %v644 = vld [vmem:[%s7] sm:$0x1]
        %v646 = vlaneseq
        %v647 = vshrl.u32 %v646, 7
        %v648 = vsub.s32 0, %v647
        %v649 = vrot.slane %v644, %v648
        %651 = vmatprep.subr.mxu0 0.0
        %652 = vmatpush1.msra.mxu0 %v640
        %653 = vmatprep.subr.mxu0 0.0
        %654 = vmatpush1.msra.mxu0 %v641
        %655 = vmatprep.subr.mxu0 0.0
        %656 = vmatpush1.msra.mxu0 %v642
        %657 = vmatprep.subr.mxu0 0.0
        %658 = vmatpush1.msra.mxu0 %v643
        %659 = vmatprep.subr.mxu0 0.0
        %660 = vmatpush1.msra.mxu0 0.0
        %661 = vmatprep.subr.mxu0 0.0
        %662 = vmatpush1.msra.mxu0 0.0
        %663 = vmatprep.subr.mxu0 0.0
        %664 = vmatpush1.msra.mxu0 0.0
        %665 = vmatprep.subr.mxu0 0.0
        %666 = vmatpush1.msra.mxu0 0.0
        %667 = vmatprep.subr.mxu0 0.0
        %668 = vmatpush1.msra.mxu0 0.0
        %669 = vmatprep.subr.mxu0 0.0
        %670 = vmatpush1.msra.mxu0 0.0
        %671 = vmatprep.subr.mxu0 0.0
        %672 = vmatpush1.msra.mxu0 0.0
        %673 = vmatprep.subr.mxu0 0.0
        %674 = vmatpush1.msra.mxu0 0.0
        %675 = vmatprep.subr.mxu0 0.0
        %676 = vmatpush1.msra.mxu0 0.0
        %677 = vmatprep.subr.mxu0 0.0
        %678 = vmatpush1.msra.mxu0 0.0
        %679 = vmatprep.subr.mxu0 0.0
        %680 = vmatpush1.msra.mxu0 0.0
        %681 = vmatprep.subr.mxu0 0.0
        %682 = vmatpush1.msra.mxu0 0.0
        %683 = vmatprep.subr.mxu0 0.0
        %684 = vmatpush1.msra.mxu0 0.0
        %685 = vmatprep.subr.mxu0 0.0
        %686 = vmatpush1.msra.mxu0 0.0
        %687 = vmatprep.subr.mxu0 0.0
        %688 = vmatpush1.msra.mxu0 0.0
        %689 = vmatprep.subr.mxu0 0.0
        %690 = vmatpush1.msra.mxu0 0.0
        %691 = vmatprep.subr.mxu0 0.0
        %692 = vmatpush1.msra.mxu0 0.0
        %693 = vmatprep.subr.mxu0 0.0
        %694 = vmatpush1.msra.mxu0 0.0
        %695 = vmatprep.subr.mxu0 0.0
        %696 = vmatpush1.msra.mxu0 0.0
        %697 = vmatprep.subr.mxu0 0.0
        %698 = vmatpush1.msra.mxu0 0.0
        %699 = vmatprep.subr.mxu0 0.0
        %700 = vmatpush1.msra.mxu0 0.0
        %701 = vmatprep.subr.mxu0 0.0
        %702 = vmatpush1.msra.mxu0 0.0
        %703 = vmatprep.subr.mxu0 0.0
        %704 = vmatpush1.msra.mxu0 0.0
        %705 = vmatprep.subr.mxu0 0.0
        %706 = vmatpush1.msra.mxu0 0.0
        %707 = vmatprep.subr.mxu0 0.0
        %708 = vmatpush1.msra.mxu0 0.0
        %709 = vmatprep.subr.mxu0 0.0
        %710 = vmatpush1.msra.mxu0 0.0
        %711 = vmatprep.subr.mxu0 0.0
        %712 = vmatpush1.msra.mxu0 0.0
        %713 = vmatprep.subr.mxu0 0.0
        %714 = vmatpush1.msra.mxu0 0.0
        %715 = vmatprep.mubr.f32.mxu0 0.0
        %716 = vmatmul.mubr.f32.gmra.mrb[0].mxu0 %v487
        %v717 = vpop.f32.mrb[0].mxu0
        %v718 = vadd.f32 %v649, %v717
        %v719 = vpop.f32.mrb[0].mxu0
        %720 = vdwg.mxu0
        %v721 = vld [vmem:[%s415] sm:$0xff]
        %vm722 = vcmask 64512
        %v724 = vsel %vm722, %v556, 0
        %v727 = vsel %vm722, %v637, 0
        %729 = vmatprep.subr.mxu0 0.0
        %730 = vmatpush1.xpose.msra.mxu0 %v727
        %731 = vmatprep.subr.mxu0 0.0
        %732 = vmatpush1.xpose.msra.mxu0 0.0
        %733 = vmatprep.subr.mxu0 0.0
        %734 = vmatpush1.xpose.msra.mxu0 0.0
        %735 = vmatprep.subr.mxu0 0.0
        %736 = vmatpush1.xpose.msra.mxu0 0.0
        %737 = vmatprep.subr.mxu0 0.0
        %738 = vmatpush1.xpose.msra.mxu0 0.0
        %739 = vmatprep.subr.mxu0 0.0
        %740 = vmatpush1.xpose.msra.mxu0 0.0
        %741 = vmatprep.subr.mxu0 0.0
        %742 = vmatpush1.xpose.msra.mxu0 0.0
        %743 = vmatprep.subr.mxu0 0.0
        %744 = vmatpush1.xpose.msra.mxu0 0.0
        %745 = vmatprep.subr.mxu0 0.0
        %746 = vmatpush1.xpose.msra.mxu0 0.0
        %747 = vmatprep.subr.mxu0 0.0
        %748 = vmatpush1.xpose.msra.mxu0 0.0
        %749 = vmatprep.subr.mxu0 0.0
        %750 = vmatpush1.xpose.msra.mxu0 0.0
        %751 = vmatprep.subr.mxu0 0.0
        %752 = vmatpush1.xpose.msra.mxu0 0.0
        %753 = vmatprep.subr.mxu0 0.0
        %754 = vmatpush1.xpose.msra.mxu0 0.0
        %755 = vmatprep.subr.mxu0 0.0
        %756 = vmatpush1.xpose.msra.mxu0 0.0
        %757 = vmatprep.subr.mxu0 0.0
        %758 = vmatpush1.xpose.msra.mxu0 0.0
        %759 = vmatprep.subr.mxu0 0.0
        %760 = vmatpush1.xpose.msra.mxu0 0.0
        %761 = vmatprep.subr.mxu0 0.0
        %762 = vmatpush1.xpose.msra.mxu0 0.0
        %763 = vmatprep.subr.mxu0 0.0
        %764 = vmatpush1.xpose.msra.mxu0 0.0
        %765 = vmatprep.subr.mxu0 0.0
        %766 = vmatpush1.xpose.msra.mxu0 0.0
        %767 = vmatprep.subr.mxu0 0.0
        %768 = vmatpush1.xpose.msra.mxu0 0.0
        %769 = vmatprep.subr.mxu0 0.0
        %770 = vmatpush1.xpose.msra.mxu0 0.0
        %771 = vmatprep.subr.mxu0 0.0
        %772 = vmatpush1.xpose.msra.mxu0 0.0
        %773 = vmatprep.subr.mxu0 0.0
        %774 = vmatpush1.xpose.msra.mxu0 0.0
        %775 = vmatprep.subr.mxu0 0.0
        %776 = vmatpush1.xpose.msra.mxu0 0.0
        %777 = vmatprep.subr.mxu0 0.0
        %778 = vmatpush1.xpose.msra.mxu0 0.0
        %779 = vmatprep.subr.mxu0 0.0
        %780 = vmatpush1.xpose.msra.mxu0 0.0
        %781 = vmatprep.subr.mxu0 0.0
        %782 = vmatpush1.xpose.msra.mxu0 0.0
        %783 = vmatprep.subr.mxu0 0.0
        %784 = vmatpush1.xpose.msra.mxu0 0.0
        %785 = vmatprep.subr.mxu0 0.0
        %786 = vmatpush1.xpose.msra.mxu0 0.0
        %787 = vmatprep.subr.mxu0 0.0
        %788 = vmatpush1.xpose.msra.mxu0 0.0
        %789 = vmatprep.subr.mxu0 0.0
        %790 = vmatpush1.xpose.msra.mxu0 0.0
        %791 = vmatprep.subr.mxu0 0.0
        %792 = vmatpush1.xpose.msra.mxu0 0.0
        %793 = vmatprep.mubr.f32.mxu0 0.0
        %794 = vmatmul.mubr.f32.gmra.mrb[0].mxu0 %v724
        %v795 = vpop.f32.mrb[0].mxu0
        %v796 = vadd.f32 %v721, %v795
        %v797 = vpop.f32.mrb[0].mxu0
        %798 = vdwg.mxu0
        %v799 = vsel %vm722, %v796, -inf
        %800 = vmax.xlane.f32.xlu0 %v799
        %v801 = vpop.xlane.xlu0 %800
        %v802 = vsub.f32 %v796, %v801
        %v803 = vmul.f32 %v802, 1.442695
        %v804 = vpow.pop %v803
        %v805 = vsel %vm722, %v804, 0.0
        %806 = vadd.xlane.f32.xlu0 %v805
        %v807 = vpop.xlane.xlu0 %806
        %v809 = vsel %vm722, %v804, 0
        %811 = vmatprep.subr.mxu0 0.0
        %812 = vmatpush1.msra.mxu0 %v718
        %813 = vmatprep.subr.mxu0 0.0
        %814 = vmatpush1.msra.mxu0 0.0
        %815 = vmatprep.subr.mxu0 0.0
        %816 = vmatpush1.msra.mxu0 0.0
        %817 = vmatprep.subr.mxu0 0.0
        %818 = vmatpush1.msra.mxu0 0.0
        %819 = vmatprep.subr.mxu0 0.0
        %820 = vmatpush1.msra.mxu0 0.0
        %821 = vmatprep.subr.mxu0 0.0
        %822 = vmatpush1.msra.mxu0 0.0
        %823 = vmatprep.subr.mxu0 0.0
        %824 = vmatpush1.msra.mxu0 0.0
        %825 = vmatprep.subr.mxu0 0.0
        %826 = vmatpush1.msra.mxu0 0.0
        %827 = vmatprep.subr.mxu0 0.0
        %828 = vmatpush1.msra.mxu0 0.0
        %829 = vmatprep.subr.mxu0 0.0
        %830 = vmatpush1.msra.mxu0 0.0
        %831 = vmatprep.subr.mxu0 0.0
        %832 = vmatpush1.msra.mxu0 0.0
        %833 = vmatprep.subr.mxu0 0.0
        %834 = vmatpush1.msra.mxu0 0.0
        %835 = vmatprep.subr.mxu0 0.0
        %836 = vmatpush1.msra.mxu0 0.0
        %837 = vmatprep.subr.mxu0 0.0
        %838 = vmatpush1.msra.mxu0 0.0
        %839 = vmatprep.subr.mxu0 0.0
        %840 = vmatpush1.msra.mxu0 0.0
        %841 = vmatprep.subr.mxu0 0.0
        %842 = vmatpush1.msra.mxu0 0.0
        %843 = vmatprep.subr.mxu0 0.0
        %844 = vmatpush1.msra.mxu0 0.0
        %845 = vmatprep.subr.mxu0 0.0
        %846 = vmatpush1.msra.mxu0 0.0
        %847 = vmatprep.subr.mxu0 0.0
        %848 = vmatpush1.msra.mxu0 0.0
        %849 = vmatprep.subr.mxu0 0.0
        %850 = vmatpush1.msra.mxu0 0.0
        %851 = vmatprep.subr.mxu0 0.0
        %852 = vmatpush1.msra.mxu0 0.0
        %853 = vmatprep.subr.mxu0 0.0
        %854 = vmatpush1.msra.mxu0 0.0
        %855 = vmatprep.subr.mxu0 0.0
        %856 = vmatpush1.msra.mxu0 0.0
        %857 = vmatprep.subr.mxu0 0.0
        %858 = vmatpush1.msra.mxu0 0.0
        %859 = vmatprep.subr.mxu0 0.0
        %860 = vmatpush1.msra.mxu0 0.0
        %861 = vmatprep.subr.mxu0 0.0
        %862 = vmatpush1.msra.mxu0 0.0
        %863 = vmatprep.subr.mxu0 0.0
        %864 = vmatpush1.msra.mxu0 0.0
        %865 = vmatprep.subr.mxu0 0.0
        %866 = vmatpush1.msra.mxu0 0.0
        %867 = vmatprep.subr.mxu0 0.0
        %868 = vmatpush1.msra.mxu0 0.0
        %869 = vmatprep.subr.mxu0 0.0
        %870 = vmatpush1.msra.mxu0 0.0
        %871 = vmatprep.subr.mxu0 0.0
        %872 = vmatpush1.msra.mxu0 0.0
        %873 = vmatprep.subr.mxu0 0.0
        %874 = vmatpush1.msra.mxu0 0.0
        %875 = vmatprep.mubr.f32.mxu0 0.0
        %876 = vmatmul.mubr.f32.gmra.mrb[0].mxu0 %v809
        %v877 = vpop.f32.mrb[0].mxu0
        %v878 = vadd.f32 0.0, %v877
        %v879 = vpop.f32.mrb[0].mxu0
        %880 = vdwg.mxu0
        %v881 = vrcp.pop %v807
        %v882 = vmul.f32 %v878, %v881
        %883 = vst.msk [vmem:[#allocation2] sm:$0xff] %vm722, %v882
        %s884 = scalar_lea.vmem %s415, 8 [#allocation6]
        %v885 = vld [vmem:[%s884] sm:$0xff]
        %886 = vrot.lane.b32.xlu0 %v556, 120
        %v887 = vpop.permute.xlu0 %886
        %888 = vrot.lane.b32.xlu0 %v637, 120
        %v889 = vpop.permute.xlu0 %888
        %v890 = vsel %vm722, %v887, 0
        %v892 = vsel %vm722, %v889, 0
        %894 = vmatprep.subr.mxu0 0.0
        %895 = vmatpush1.xpose.msra.mxu0 %v892
        %896 = vmatprep.subr.mxu0 0.0
        %897 = vmatpush1.xpose.msra.mxu0 0.0
        %898 = vmatprep.subr.mxu0 0.0
        %899 = vmatpush1.xpose.msra.mxu0 0.0
        %900 = vmatprep.subr.mxu0 0.0
        %901 = vmatpush1.xpose.msra.mxu0 0.0
        %902 = vmatprep.subr.mxu0 0.0
        %903 = vmatpush1.xpose.msra.mxu0 0.0
        %904 = vmatprep.subr.mxu0 0.0
        %905 = vmatpush1.xpose.msra.mxu0 0.0
        %906 = vmatprep.subr.mxu0 0.0
        %907 = vmatpush1.xpose.msra.mxu0 0.0
        %908 = vmatprep.subr.mxu0 0.0
        %909 = vmatpush1.xpose.msra.mxu0 0.0
        %910 = vmatprep.subr.mxu0 0.0
        %911 = vmatpush1.xpose.msra.mxu0 0.0
        %912 = vmatprep.subr.mxu0 0.0
        %913 = vmatpush1.xpose.msra.mxu0 0.0
        %914 = vmatprep.subr.mxu0 0.0
        %915 = vmatpush1.xpose.msra.mxu0 0.0
        %916 = vmatprep.subr.mxu0 0.0
        %917 = vmatpush1.xpose.msra.mxu0 0.0
        %918 = vmatprep.subr.mxu0 0.0
        %919 = vmatpush1.xpose.msra.mxu0 0.0
        %920 = vmatprep.subr.mxu0 0.0
        %921 = vmatpush1.xpose.msra.mxu0 0.0
        %922 = vmatprep.subr.mxu0 0.0
        %923 = vmatpush1.xpose.msra.mxu0 0.0
        %924 = vmatprep.subr.mxu0 0.0
        %925 = vmatpush1.xpose.msra.mxu0 0.0
        %926 = vmatprep.subr.mxu0 0.0
        %927 = vmatpush1.xpose.msra.mxu0 0.0
        %928 = vmatprep.subr.mxu0 0.0
        %929 = vmatpush1.xpose.msra.mxu0 0.0
        %930 = vmatprep.subr.mxu0 0.0
        %931 = vmatpush1.xpose.msra.mxu0 0.0
        %932 = vmatprep.subr.mxu0 0.0
        %933 = vmatpush1.xpose.msra.mxu0 0.0
        %934 = vmatprep.subr.mxu0 0.0
        %935 = vmatpush1.xpose.msra.mxu0 0.0
        %936 = vmatprep.subr.mxu0 0.0
        %937 = vmatpush1.xpose.msra.mxu0 0.0
        %938 = vmatprep.subr.mxu0 0.0
        %939 = vmatpush1.xpose.msra.mxu0 0.0
        %940 = vmatprep.subr.mxu0 0.0
        %941 = vmatpush1.xpose.msra.mxu0 0.0
        %942 = vmatprep.subr.mxu0 0.0
        %943 = vmatpush1.xpose.msra.mxu0 0.0
        %944 = vmatprep.subr.mxu0 0.0
        %945 = vmatpush1.xpose.msra.mxu0 0.0
        %946 = vmatprep.subr.mxu0 0.0
        %947 = vmatpush1.xpose.msra.mxu0 0.0
        %948 = vmatprep.subr.mxu0 0.0
        %949 = vmatpush1.xpose.msra.mxu0 0.0
        %950 = vmatprep.subr.mxu0 0.0
        %951 = vmatpush1.xpose.msra.mxu0 0.0
        %952 = vmatprep.subr.mxu0 0.0
        %953 = vmatpush1.xpose.msra.mxu0 0.0
        %954 = vmatprep.subr.mxu0 0.0
        %955 = vmatpush1.xpose.msra.mxu0 0.0
        %956 = vmatprep.subr.mxu0 0.0
        %957 = vmatpush1.xpose.msra.mxu0 0.0
        %958 = vmatprep.mubr.f32.mxu0 0.0
        %959 = vmatmul.mubr.f32.gmra.mrb[0].mxu0 %v890
        %v960 = vpop.f32.mrb[0].mxu0
        %v961 = vadd.f32 %v885, %v960
        %v962 = vpop.f32.mrb[0].mxu0
        %963 = vdwg.mxu0
        %v964 = vsel %vm722, %v961, -inf
        %965 = vmax.xlane.f32.xlu0 %v964
        %v966 = vpop.xlane.xlu0 %965
        %v967 = vsub.f32 %v961, %v966
        %v968 = vmul.f32 %v967, 1.442695
        %v969 = vpow.pop %v968
        %v970 = vsel %vm722, %v969, 0.0
        %971 = vadd.xlane.f32.xlu0 %v970
        %v972 = vpop.xlane.xlu0 %971
        %974 = vrot.lane.b32.xlu0 %v718, 120
        %v975 = vpop.permute.xlu0 %974
        %v978 = vsel %vm722, %v969, 0
        %980 = vmatprep.subr.mxu0 0.0
        %981 = vmatpush1.msra.mxu0 %v975
        %982 = vmatprep.subr.mxu0 0.0
        %983 = vmatpush1.msra.mxu0 0.0
        %984 = vmatprep.subr.mxu0 0.0
        %985 = vmatpush1.msra.mxu0 0.0
        %986 = vmatprep.subr.mxu0 0.0
        %987 = vmatpush1.msra.mxu0 0.0
        %988 = vmatprep.subr.mxu0 0.0
        %989 = vmatpush1.msra.mxu0 0.0
        %990 = vmatprep.subr.mxu0 0.0
        %991 = vmatpush1.msra.mxu0 0.0
        %992 = vmatprep.subr.mxu0 0.0
        %993 = vmatpush1.msra.mxu0 0.0
        %994 = vmatprep.subr.mxu0 0.0
        %995 = vmatpush1.msra.mxu0 0.0
        %996 = vmatprep.subr.mxu0 0.0
        %997 = vmatpush1.msra.mxu0 0.0
        %998 = vmatprep.subr.mxu0 0.0
        %999 = vmatpush1.msra.mxu0 0.0
        %1000 = vmatprep.subr.mxu0 0.0
        %1001 = vmatpush1.msra.mxu0 0.0
        %1002 = vmatprep.subr.mxu0 0.0
        %1003 = vmatpush1.msra.mxu0 0.0
        %1004 = vmatprep.subr.mxu0 0.0
        %1005 = vmatpush1.msra.mxu0 0.0
        %1006 = vmatprep.subr.mxu0 0.0
        %1007 = vmatpush1.msra.mxu0 0.0
        %1008 = vmatprep.subr.mxu0 0.0
        %1009 = vmatpush1.msra.mxu0 0.0
        %1010 = vmatprep.subr.mxu0 0.0
        %1011 = vmatpush1.msra.mxu0 0.0
        %1012 = vmatprep.subr.mxu0 0.0
        %1013 = vmatpush1.msra.mxu0 0.0
        %1014 = vmatprep.subr.mxu0 0.0
        %1015 = vmatpush1.msra.mxu0 0.0
        %1016 = vmatprep.subr.mxu0 0.0
        %1017 = vmatpush1.msra.mxu0 0.0
        %1018 = vmatprep.subr.mxu0 0.0
        %1019 = vmatpush1.msra.mxu0 0.0
        %1020 = vmatprep.subr.mxu0 0.0
        %1021 = vmatpush1.msra.mxu0 0.0
        %1022 = vmatprep.subr.mxu0 0.0
        %1023 = vmatpush1.msra.mxu0 0.0
        %1024 = vmatprep.subr.mxu0 0.0
        %1025 = vmatpush1.msra.mxu0 0.0
        %1026 = vmatprep.subr.mxu0 0.0
        %1027 = vmatpush1.msra.mxu0 0.0
        %1028 = vmatprep.subr.mxu0 0.0
        %1029 = vmatpush1.msra.mxu0 0.0
        %1030 = vmatprep.subr.mxu0 0.0
        %1031 = vmatpush1.msra.mxu0 0.0
        %1032 = vmatprep.subr.mxu0 0.0
        %1033 = vmatpush1.msra.mxu0 0.0
        %1034 = vmatprep.subr.mxu0 0.0
        %1035 = vmatpush1.msra.mxu0 0.0
        %1036 = vmatprep.subr.mxu0 0.0
        %1037 = vmatpush1.msra.mxu0 0.0
        %1038 = vmatprep.subr.mxu0 0.0
        %1039 = vmatpush1.msra.mxu0 0.0
        %1040 = vmatprep.subr.mxu0 0.0
        %1041 = vmatpush1.msra.mxu0 0.0
        %1042 = vmatprep.subr.mxu0 0.0
        %1043 = vmatpush1.msra.mxu0 0.0
        %1044 = vmatprep.mubr.f32.mxu0 0.0
        %1045 = vmatmul.mubr.f32.gmra.mrb[0].mxu0 %v978
        %v1046 = vpop.f32.mrb[0].mxu0
        %v1047 = vadd.f32 0.0, %v1046
        %v1048 = vpop.f32.mrb[0].mxu0
        %1049 = vdwg.mxu0
        %v1050 = vrcp.pop %v972
        %v1051 = vmul.f32 %v1047, %v1050
        %1053 = vrot.lane.b32.xlu0 %v1051, 8
        %v1054 = vpop.permute.xlu0 %1053
        %vm1056 = vcmask 130112
        %1057 = vst.msk [vmem:[#allocation2] sm:$0xff] %vm1056, %v1054
        %s1058 = scalar_lea.vmem %s415, 16 [#allocation6]
        %v1059 = vld [vmem:[%s1058] sm:$0xff]
        %1060 = vrot.lane.b32.xlu0 %v556, 112
        %v1061 = vpop.permute.xlu0 %1060
        %1062 = vrot.lane.b32.xlu0 %v637, 112
        %v1063 = vpop.permute.xlu0 %1062
        %v1064 = vsel %vm722, %v1061, 0
        %v1066 = vsel %vm722, %v1063, 0
        %1068 = vmatprep.subr.mxu0 0.0
        %1069 = vmatpush1.xpose.msra.mxu0 %v1066
        %1070 = vmatprep.subr.mxu0 0.0
        %1071 = vmatpush1.xpose.msra.mxu0 0.0
        %1072 = vmatprep.subr.mxu0 0.0
        %1073 = vmatpush1.xpose.msra.mxu0 0.0
        %1074 = vmatprep.subr.mxu0 0.0
        %1075 = vmatpush1.xpose.msra.mxu0 0.0
        %1076 = vmatprep.subr.mxu0 0.0
        %1077 = vmatpush1.xpose.msra.mxu0 0.0
        %1078 = vmatprep.subr.mxu0 0.0
        %1079 = vmatpush1.xpose.msra.mxu0 0.0
        %1080 = vmatprep.subr.mxu0 0.0
        %1081 = vmatpush1.xpose.msra.mxu0 0.0
        %1082 = vmatprep.subr.mxu0 0.0
        %1083 = vmatpush1.xpose.msra.mxu0 0.0
        %1084 = vmatprep.subr.mxu0 0.0
        %1085 = vmatpush1.xpose.msra.mxu0 0.0
        %1086 = vmatprep.subr.mxu0 0.0
        %1087 = vmatpush1.xpose.msra.mxu0 0.0
        %1088 = vmatprep.subr.mxu0 0.0
        %1089 = vmatpush1.xpose.msra.mxu0 0.0
        %1090 = vmatprep.subr.mxu0 0.0
        %1091 = vmatpush1.xpose.msra.mxu0 0.0
        %1092 = vmatprep.subr.mxu0 0.0
        %1093 = vmatpush1.xpose.msra.mxu0 0.0
        %1094 = vmatprep.subr.mxu0 0.0
        %1095 = vmatpush1.xpose.msra.mxu0 0.0
        %1096 = vmatprep.subr.mxu0 0.0
        %1097 = vmatpush1.xpose.msra.mxu0 0.0
        %1098 = vmatprep.subr.mxu0 0.0
        %1099 = vmatpush1.xpose.msra.mxu0 0.0
        %1100 = vmatprep.subr.mxu0 0.0
        %1101 = vmatpush1.xpose.msra.mxu0 0.0
        %1102 = vmatprep.subr.mxu0 0.0
        %1103 = vmatpush1.xpose.msra.mxu0 0.0
        %1104 = vmatprep.subr.mxu0 0.0
        %1105 = vmatpush1.xpose.msra.mxu0 0.0
        %1106 = vmatprep.subr.mxu0 0.0
        %1107 = vmatpush1.xpose.msra.mxu0 0.0
        %1108 = vmatprep.subr.mxu0 0.0
        %1109 = vmatpush1.xpose.msra.mxu0 0.0
        %1110 = vmatprep.subr.mxu0 0.0
        %1111 = vmatpush1.xpose.msra.mxu0 0.0
        %1112 = vmatprep.subr.mxu0 0.0
        %1113 = vmatpush1.xpose.msra.mxu0 0.0
        %1114 = vmatprep.subr.mxu0 0.0
        %1115 = vmatpush1.xpose.msra.mxu0 0.0
        %1116 = vmatprep.subr.mxu0 0.0
        %1117 = vmatpush1.xpose.msra.mxu0 0.0
        %1118 = vmatprep.subr.mxu0 0.0
        %1119 = vmatpush1.xpose.msra.mxu0 0.0
        %1120 = vmatprep.subr.mxu0 0.0
        %1121 = vmatpush1.xpose.msra.mxu0 0.0
        %1122 = vmatprep.subr.mxu0 0.0
        %1123 = vmatpush1.xpose.msra.mxu0 0.0
        %1124 = vmatprep.subr.mxu0 0.0
        %1125 = vmatpush1.xpose.msra.mxu0 0.0
        %1126 = vmatprep.subr.mxu0 0.0
        %1127 = vmatpush1.xpose.msra.mxu0 0.0
        %1128 = vmatprep.subr.mxu0 0.0
        %1129 = vmatpush1.xpose.msra.mxu0 0.0
        %1130 = vmatprep.subr.mxu0 0.0
        %1131 = vmatpush1.xpose.msra.mxu0 0.0
        %1132 = vmatprep.mubr.f32.mxu0 0.0
        %1133 = vmatmul.mubr.f32.gmra.mrb[0].mxu0 %v1064
        %v1134 = vpop.f32.mrb[0].mxu0
        %v1135 = vadd.f32 %v1059, %v1134
        %v1136 = vpop.f32.mrb[0].mxu0
        %1137 = vdwg.mxu0
        %v1138 = vsel %vm722, %v1135, -inf
        %1139 = vmax.xlane.f32.xlu0 %v1138
        %v1140 = vpop.xlane.xlu0 %1139
        %v1141 = vsub.f32 %v1135, %v1140
        %v1142 = vmul.f32 %v1141, 1.442695
        %v1143 = vpow.pop %v1142
        %v1144 = vsel %vm722, %v1143, 0.0
        %1145 = vadd.xlane.f32.xlu0 %v1144
        %v1146 = vpop.xlane.xlu0 %1145
        %1147 = vrot.lane.b32.xlu0 %v718, 112
        %v1148 = vpop.permute.xlu0 %1147
        %v1151 = vsel %vm722, %v1143, 0
        %1153 = vmatprep.subr.mxu0 0.0
        %1154 = vmatpush1.msra.mxu0 %v1148
        %1155 = vmatprep.subr.mxu0 0.0
        %1156 = vmatpush1.msra.mxu0 0.0
        %1157 = vmatprep.subr.mxu0 0.0
        %1158 = vmatpush1.msra.mxu0 0.0
        %1159 = vmatprep.subr.mxu0 0.0
        %1160 = vmatpush1.msra.mxu0 0.0
        %1161 = vmatprep.subr.mxu0 0.0
        %1162 = vmatpush1.msra.mxu0 0.0
        %1163 = vmatprep.subr.mxu0 0.0
        %1164 = vmatpush1.msra.mxu0 0.0
        %1165 = vmatprep.subr.mxu0 0.0
        %1166 = vmatpush1.msra.mxu0 0.0
        %1167 = vmatprep.subr.mxu0 0.0
        %1168 = vmatpush1.msra.mxu0 0.0
        %1169 = vmatprep.subr.mxu0 0.0
        %1170 = vmatpush1.msra.mxu0 0.0
        %1171 = vmatprep.subr.mxu0 0.0
        %1172 = vmatpush1.msra.mxu0 0.0
        %1173 = vmatprep.subr.mxu0 0.0
        %1174 = vmatpush1.msra.mxu0 0.0
        %1175 = vmatprep.subr.mxu0 0.0
        %1176 = vmatpush1.msra.mxu0 0.0
        %1177 = vmatprep.subr.mxu0 0.0
        %1178 = vmatpush1.msra.mxu0 0.0
        %1179 = vmatprep.subr.mxu0 0.0
        %1180 = vmatpush1.msra.mxu0 0.0
        %1181 = vmatprep.subr.mxu0 0.0
        %1182 = vmatpush1.msra.mxu0 0.0
        %1183 = vmatprep.subr.mxu0 0.0
        %1184 = vmatpush1.msra.mxu0 0.0
        %1185 = vmatprep.subr.mxu0 0.0
        %1186 = vmatpush1.msra.mxu0 0.0
        %1187 = vmatprep.subr.mxu0 0.0
        %1188 = vmatpush1.msra.mxu0 0.0
        %1189 = vmatprep.subr.mxu0 0.0
        %1190 = vmatpush1.msra.mxu0 0.0
        %1191 = vmatprep.subr.mxu0 0.0
        %1192 = vmatpush1.msra.mxu0 0.0
        %1193 = vmatprep.subr.mxu0 0.0
        %1194 = vmatpush1.msra.mxu0 0.0
        %1195 = vmatprep.subr.mxu0 0.0
        %1196 = vmatpush1.msra.mxu0 0.0
        %1197 = vmatprep.subr.mxu0 0.0
        %1198 = vmatpush1.msra.mxu0 0.0
        %1199 = vmatprep.subr.mxu0 0.0
        %1200 = vmatpush1.msra.mxu0 0.0
        %1201 = vmatprep.subr.mxu0 0.0
        %1202 = vmatpush1.msra.mxu0 0.0
        %1203 = vmatprep.subr.mxu0 0.0
        %1204 = vmatpush1.msra.mxu0 0.0
        %1205 = vmatprep.subr.mxu0 0.0
        %1206 = vmatpush1.msra.mxu0 0.0
        %1207 = vmatprep.subr.mxu0 0.0
        %1208 = vmatpush1.msra.mxu0 0.0
        %1209 = vmatprep.subr.mxu0 0.0
        %1210 = vmatpush1.msra.mxu0 0.0
        %1211 = vmatprep.subr.mxu0 0.0
        %1212 = vmatpush1.msra.mxu0 0.0
        %1213 = vmatprep.subr.mxu0 0.0
        %1214 = vmatpush1.msra.mxu0 0.0
        %1215 = vmatprep.subr.mxu0 0.0
        %1216 = vmatpush1.msra.mxu0 0.0
        %1217 = vmatprep.mubr.f32.mxu0 0.0
        %1218 = vmatmul.mubr.f32.gmra.mrb[0].mxu0 %v1151
        %v1219 = vpop.f32.mrb[0].mxu0
        %v1220 = vadd.f32 0.0, %v1219
        %v1221 = vpop.f32.mrb[0].mxu0
        %1222 = vdwg.mxu0
        %v1223 = vrcp.pop %v1146
        %v1224 = vmul.f32 %v1220, %v1223
        %1226 = vrot.lane.b32.xlu0 %v1224, 16
        %v1227 = vpop.permute.xlu0 %1226
        %vm1229 = vcmask 195712
        %1230 = vst.msk [vmem:[#allocation2] sm:$0xff] %vm1229, %v1227
        %s1231 = scalar_lea.vmem %s415, 24 [#allocation6]
        %v1232 = vld [vmem:[%s1231] sm:$0xff]
        %1233 = vrot.lane.b32.xlu0 %v556, 104
        %v1234 = vpop.permute.xlu0 %1233
        %1235 = vrot.lane.b32.xlu0 %v637, 104
        %v1236 = vpop.permute.xlu0 %1235
        %v1237 = vsel %vm722, %v1234, 0
        %v1239 = vsel %vm722, %v1236, 0
        %1241 = vmatprep.subr.mxu0 0.0
        %1242 = vmatpush1.xpose.msra.mxu0 %v1239
        %1243 = vmatprep.subr.mxu0 0.0
        %1244 = vmatpush1.xpose.msra.mxu0 0.0
        %1245 = vmatprep.subr.mxu0 0.0
        %1246 = vmatpush1.xpose.msra.mxu0 0.0
        %1247 = vmatprep.subr.mxu0 0.0
        %1248 = vmatpush1.xpose.msra.mxu0 0.0
        %1249 = vmatprep.subr.mxu0 0.0
        %1250 = vmatpush1.xpose.msra.mxu0 0.0
        %1251 = vmatprep.subr.mxu0 0.0
        %1252 = vmatpush1.xpose.msra.mxu0 0.0
        %1253 = vmatprep.subr.mxu0 0.0
        %1254 = vmatpush1.xpose.msra.mxu0 0.0
        %1255 = vmatprep.subr.mxu0 0.0
        %1256 = vmatpush1.xpose.msra.mxu0 0.0
        %1257 = vmatprep.subr.mxu0 0.0
        %1258 = vmatpush1.xpose.msra.mxu0 0.0
        %1259 = vmatprep.subr.mxu0 0.0
        %1260 = vmatpush1.xpose.msra.mxu0 0.0
        %1261 = vmatprep.subr.mxu0 0.0
        %1262 = vmatpush1.xpose.msra.mxu0 0.0
        %1263 = vmatprep.subr.mxu0 0.0
        %1264 = vmatpush1.xpose.msra.mxu0 0.0
        %1265 = vmatprep.subr.mxu0 0.0
        %1266 = vmatpush1.xpose.msra.mxu0 0.0
        %1267 = vmatprep.subr.mxu0 0.0
        %1268 = vmatpush1.xpose.msra.mxu0 0.0
        %1269 = vmatprep.subr.mxu0 0.0
        %1270 = vmatpush1.xpose.msra.mxu0 0.0
        %1271 = vmatprep.subr.mxu0 0.0
        %1272 = vmatpush1.xpose.msra.mxu0 0.0
        %1273 = vmatprep.subr.mxu0 0.0
        %1274 = vmatpush1.xpose.msra.mxu0 0.0
        %1275 = vmatprep.subr.mxu0 0.0
        %1276 = vmatpush1.xpose.msra.mxu0 0.0
        %1277 = vmatprep.subr.mxu0 0.0
        %1278 = vmatpush1.xpose.msra.mxu0 0.0
        %1279 = vmatprep.subr.mxu0 0.0
        %1280 = vmatpush1.xpose.msra.mxu0 0.0
        %1281 = vmatprep.subr.mxu0 0.0
        %1282 = vmatpush1.xpose.msra.mxu0 0.0
        %1283 = vmatprep.subr.mxu0 0.0
        %1284 = vmatpush1.xpose.msra.mxu0 0.0
        %1285 = vmatprep.subr.mxu0 0.0
        %1286 = vmatpush1.xpose.msra.mxu0 0.0
        %1287 = vmatprep.subr.mxu0 0.0
        %1288 = vmatpush1.xpose.msra.mxu0 0.0
        %1289 = vmatprep.subr.mxu0 0.0
        %1290 = vmatpush1.xpose.msra.mxu0 0.0
        %1291 = vmatprep.subr.mxu0 0.0
        %1292 = vmatpush1.xpose.msra.mxu0 0.0
        %1293 = vmatprep.subr.mxu0 0.0
        %1294 = vmatpush1.xpose.msra.mxu0 0.0
        %1295 = vmatprep.subr.mxu0 0.0
        %1296 = vmatpush1.xpose.msra.mxu0 0.0
        %1297 = vmatprep.subr.mxu0 0.0
        %1298 = vmatpush1.xpose.msra.mxu0 0.0
        %1299 = vmatprep.subr.mxu0 0.0
        %1300 = vmatpush1.xpose.msra.mxu0 0.0
        %1301 = vmatprep.subr.mxu0 0.0
        %1302 = vmatpush1.xpose.msra.mxu0 0.0
        %1303 = vmatprep.subr.mxu0 0.0
        %1304 = vmatpush1.xpose.msra.mxu0 0.0
        %1305 = vmatprep.mubr.f32.mxu0 0.0
        %1306 = vmatmul.mubr.f32.gmra.mrb[0].mxu0 %v1237
        %v1307 = vpop.f32.mrb[0].mxu0
        %v1308 = vadd.f32 %v1232, %v1307
        %v1309 = vpop.f32.mrb[0].mxu0
        %1310 = vdwg.mxu0
        %v1311 = vsel %vm722, %v1308, -inf
        %1312 = vmax.xlane.f32.xlu0 %v1311
        %v1313 = vpop.xlane.xlu0 %1312
        %v1314 = vsub.f32 %v1308, %v1313
        %v1315 = vmul.f32 %v1314, 1.442695
        %v1316 = vpow.pop %v1315
        %v1317 = vsel %vm722, %v1316, 0.0
        %1318 = vadd.xlane.f32.xlu0 %v1317
        %v1319 = vpop.xlane.xlu0 %1318
        %1320 = vrot.lane.b32.xlu0 %v718, 104
        %v1321 = vpop.permute.xlu0 %1320
        %v1324 = vsel %vm722, %v1316, 0
        %1326 = vmatprep.subr.mxu0 0.0
        %1327 = vmatpush1.msra.mxu0 %v1321
        %1328 = vmatprep.subr.mxu0 0.0
        %1329 = vmatpush1.msra.mxu0 0.0
        %1330 = vmatprep.subr.mxu0 0.0
        %1331 = vmatpush1.msra.mxu0 0.0
        %1332 = vmatprep.subr.mxu0 0.0
        %1333 = vmatpush1.msra.mxu0 0.0
        %1334 = vmatprep.subr.mxu0 0.0
        %1335 = vmatpush1.msra.mxu0 0.0
        %1336 = vmatprep.subr.mxu0 0.0
        %1337 = vmatpush1.msra.mxu0 0.0
        %1338 = vmatprep.subr.mxu0 0.0
        %1339 = vmatpush1.msra.mxu0 0.0
        %1340 = vmatprep.subr.mxu0 0.0
        %1341 = vmatpush1.msra.mxu0 0.0
        %1342 = vmatprep.subr.mxu0 0.0
        %1343 = vmatpush1.msra.mxu0 0.0
        %1344 = vmatprep.subr.mxu0 0.0
        %1345 = vmatpush1.msra.mxu0 0.0
        %1346 = vmatprep.subr.mxu0 0.0
        %1347 = vmatpush1.msra.mxu0 0.0
        %1348 = vmatprep.subr.mxu0 0.0
        %1349 = vmatpush1.msra.mxu0 0.0
        %1350 = vmatprep.subr.mxu0 0.0
        %1351 = vmatpush1.msra.mxu0 0.0
        %1352 = vmatprep.subr.mxu0 0.0
        %1353 = vmatpush1.msra.mxu0 0.0
        %1354 = vmatprep.subr.mxu0 0.0
        %1355 = vmatpush1.msra.mxu0 0.0
        %1356 = vmatprep.subr.mxu0 0.0
        %1357 = vmatpush1.msra.mxu0 0.0
        %1358 = vmatprep.subr.mxu0 0.0
        %1359 = vmatpush1.msra.mxu0 0.0
        %1360 = vmatprep.subr.mxu0 0.0
        %1361 = vmatpush1.msra.mxu0 0.0
        %1362 = vmatprep.subr.mxu0 0.0
        %1363 = vmatpush1.msra.mxu0 0.0
        %1364 = vmatprep.subr.mxu0 0.0
        %1365 = vmatpush1.msra.mxu0 0.0
        %1366 = vmatprep.subr.mxu0 0.0
        %1367 = vmatpush1.msra.mxu0 0.0
        %1368 = vmatprep.subr.mxu0 0.0
        %1369 = vmatpush1.msra.mxu0 0.0
        %1370 = vmatprep.subr.mxu0 0.0
        %1371 = vmatpush1.msra.mxu0 0.0
        %1372 = vmatprep.subr.mxu0 0.0
        %1373 = vmatpush1.msra.mxu0 0.0
        %1374 = vmatprep.subr.mxu0 0.0
        %1375 = vmatpush1.msra.mxu0 0.0
        %1376 = vmatprep.subr.mxu0 0.0
        %1377 = vmatpush1.msra.mxu0 0.0
        %1378 = vmatprep.subr.mxu0 0.0
        %1379 = vmatpush1.msra.mxu0 0.0
        %1380 = vmatprep.subr.mxu0 0.0
        %1381 = vmatpush1.msra.mxu0 0.0
        %1382 = vmatprep.subr.mxu0 0.0
        %1383 = vmatpush1.msra.mxu0 0.0
        %1384 = vmatprep.subr.mxu0 0.0
        %1385 = vmatpush1.msra.mxu0 0.0
        %1386 = vmatprep.subr.mxu0 0.0
        %1387 = vmatpush1.msra.mxu0 0.0
        %1388 = vmatprep.subr.mxu0 0.0
        %1389 = vmatpush1.msra.mxu0 0.0
        %1390 = vmatprep.mubr.f32.mxu0 0.0
        %1391 = vmatmul.mubr.f32.gmra.mrb[0].mxu0 %v1324
        %v1392 = vpop.f32.mrb[0].mxu0
        %v1393 = vadd.f32 0.0, %v1392
        %v1394 = vpop.f32.mrb[0].mxu0
        %1395 = vdwg.mxu0
        %v1396 = vrcp.pop %v1319
        %v1397 = vmul.f32 %v1393, %v1396
        %1399 = vrot.lane.b32.xlu0 %v1397, 24
        %v1400 = vpop.permute.xlu0 %1399
        %vm1402 = vcmask 261312
        %1403 = vst.msk [vmem:[#allocation2] sm:$0xff] %vm1402, %v1400
        %v1404 = vld [vmem:[#allocation2] sm:$0xff]
        %v1405 = vld [vmem:[#allocation12] sm:$0xff]
        %v1406 = vld [vmem:[#allocation12 + $0x8] sm:$0xff]
        %v1407 = vld [vmem:[#allocation12 + $0x10] sm:$0xff]
        %v1408 = vld [vmem:[#allocation12 + $0x18] sm:$0xff]
        %v1409 = vld [vmem:[%s9] sm:$0x1]
        %v1411 = vlaneseq
        %v1412 = vshrl.u32 %v1411, 7
        %v1413 = vsub.s32 0, %v1412
        %v1414 = vrot.slane %v1409, %v1413
        %v1417 = vsel %vm485, %v1404, 0
        %1419 = vmatprep.subr.mxu0 0.0
        %1420 = vmatpush1.msra.mxu0 %v1405
        %1421 = vmatprep.subr.mxu0 0.0
        %1422 = vmatpush1.msra.mxu0 %v1406
        %1423 = vmatprep.subr.mxu0 0.0
        %1424 = vmatpush1.msra.mxu0 %v1407
        %1425 = vmatprep.subr.mxu0 0.0
        %1426 = vmatpush1.msra.mxu0 %v1408
        %1427 = vmatprep.subr.mxu0 0.0
        %1428 = vmatpush1.msra.mxu0 0.0
        %1429 = vmatprep.subr.mxu0 0.0
        %1430 = vmatpush1.msra.mxu0 0.0
        %1431 = vmatprep.subr.mxu0 0.0
        %1432 = vmatpush1.msra.mxu0 0.0
        %1433 = vmatprep.subr.mxu0 0.0
        %1434 = vmatpush1.msra.mxu0 0.0
        %1435 = vmatprep.subr.mxu0 0.0
        %1436 = vmatpush1.msra.mxu0 0.0
        %1437 = vmatprep.subr.mxu0 0.0
        %1438 = vmatpush1.msra.mxu0 0.0
        %1439 = vmatprep.subr.mxu0 0.0
        %1440 = vmatpush1.msra.mxu0 0.0
        %1441 = vmatprep.subr.mxu0 0.0
        %1442 = vmatpush1.msra.mxu0 0.0
        %1443 = vmatprep.subr.mxu0 0.0
        %1444 = vmatpush1.msra.mxu0 0.0
        %1445 = vmatprep.subr.mxu0 0.0
        %1446 = vmatpush1.msra.mxu0 0.0
        %1447 = vmatprep.subr.mxu0 0.0
        %1448 = vmatpush1.msra.mxu0 0.0
        %1449 = vmatprep.subr.mxu0 0.0
        %1450 = vmatpush1.msra.mxu0 0.0
        %1451 = vmatprep.subr.mxu0 0.0
        %1452 = vmatpush1.msra.mxu0 0.0
        %1453 = vmatprep.subr.mxu0 0.0
        %1454 = vmatpush1.msra.mxu0 0.0
        %1455 = vmatprep.subr.mxu0 0.0
        %1456 = vmatpush1.msra.mxu0 0.0
        %1457 = vmatprep.subr.mxu0 0.0
        %1458 = vmatpush1.msra.mxu0 0.0
        %1459 = vmatprep.subr.mxu0 0.0
        %1460 = vmatpush1.msra.mxu0 0.0
        %1461 = vmatprep.subr.mxu0 0.0
        %1462 = vmatpush1.msra.mxu0 0.0
        %1463 = vmatprep.subr.mxu0 0.0
        %1464 = vmatpush1.msra.mxu0 0.0
        %1465 = vmatprep.subr.mxu0 0.0
        %1466 = vmatpush1.msra.mxu0 0.0
        %1467 = vmatprep.subr.mxu0 0.0
        %1468 = vmatpush1.msra.mxu0 0.0
        %1469 = vmatprep.subr.mxu0 0.0
        %1470 = vmatpush1.msra.mxu0 0.0
        %1471 = vmatprep.subr.mxu0 0.0
        %1472 = vmatpush1.msra.mxu0 0.0
        %1473 = vmatprep.subr.mxu0 0.0
        %1474 = vmatpush1.msra.mxu0 0.0
        %1475 = vmatprep.subr.mxu0 0.0
        %1476 = vmatpush1.msra.mxu0 0.0
        %1477 = vmatprep.subr.mxu0 0.0
        %1478 = vmatpush1.msra.mxu0 0.0
        %1479 = vmatprep.subr.mxu0 0.0
        %1480 = vmatpush1.msra.mxu0 0.0
        %1481 = vmatprep.subr.mxu0 0.0
        %1482 = vmatpush1.msra.mxu0 0.0
        %1483 = vmatprep.mubr.f32.mxu0 0.0
        %1484 = vmatmul.mubr.f32.gmra.mrb[0].mxu0 %v1417
        %v1485 = vpop.f32.mrb[0].mxu0
        %v1486 = vadd.f32 %v1414, %v1485
        %v1487 = vpop.f32.mrb[0].mxu0
        %1488 = vdwg.mxu0
        %1489 = vst.msk [vmem:[%s472] sm:$0xff] %vm485, %v1486
        %s1490 = sand.u32 %s260, 1
        %s1491 = scalar_lea.sflag [#allocation5], %s1490
        %s1492 = sand.u32 %s260, 1
        %s1493 = smul.addr %s1492, 8
        %s1494 = scalar_lea.vmem [#allocation14], %s1493
        // Predicated region
        $region85: #{tpu_custom_call.1} parent=59 // pred_check
          %p1495 = pneg %p270
        $region86: #{tpu_custom_call.1} parent=59 // pred_check_branch
          %1497 = sbr.rel (%p1495) target = $region88
        $region87: #{tpu_custom_call.1} parent=59 // pred_region
          %s1499 = ssub.s32 128, 128
          %1500 = vsyncadd %s1491, %s1499
          %s1501 = smul.addr %s32, 128
          %s1502 = scalar_lea.hbm %s10, %s1501
          %s1504 = sshll.u32 %s1494, 4
          %s1505 = int_to_ptr.vmem [resolvable:$true] %s1504
          %1507 = dma.vmem_to_hbm [thread:$0]  %s1505, 128, %s1502, %s1491
        $region88: #{tpu_custom_call.1} parent=59 // pred_fallthru
          _
      $region60: #{tpu_custom_call.1} parent=5 // pred_fallthru
        _
      %p1508 = scmp.le.s32.totalorder 2, %s27
      // Predicated region
      $region89: #{tpu_custom_call.1} parent=5 // pred_check
        %p1509 = pneg %p1508
      $region90: #{tpu_custom_call.1} parent=5 // pred_check_branch
        %1511 = sbr.rel (%p1509) target = $region92
      $region91: #{tpu_custom_call.1} parent=5 // pred_region
        %s1512 = ssub.s32 %s27, 2
        // Predicated region
        $region93: #{tpu_custom_call.1} parent=91 // pred_check
          %p1513 = pneg %p276
        $region94: #{tpu_custom_call.1} parent=91 // pred_check_branch
          %1515 = sbr.rel (%p1513) target = $region96
        $region95: #{tpu_custom_call.1} parent=91 // pred_region
          %s1516 = sand.u32 %s261, 1
          %s1517 = scalar_lea.sflag [#allocation5], %s1516
          %s1518 = sand.u32 %s261, 1
          %s1519 = smul.addr %s1518, 8
          %s1520 = scalar_lea.vmem [#allocation14], %s1519
          %1521 = dma.done %s1517, 128
        $region96: #{tpu_custom_call.1} parent=91 // pred_fallthru
          _
      $region92: #{tpu_custom_call.1} parent=5 // pred_fallthru
        _
    $region6: #{tpu_custom_call.1} parent=1 // loop_footer
      %s31 = sadd.s32 1, %s27
    $region7: #{tpu_custom_call.1} parent=1 // loop_footer_branch
      %26 = sbr.rel target = $region3
    $region8: #{tpu_custom_call.1} parent=1 // loop_exit
      _
    %1522 = vsyncpa [#allocation4], 1
    %s1523 = scalar_lea.sflag [#allocation4], 1
    %1524 = vsyncpa %s1523, 1
    %1525 = vsyncpa [#allocation7], 1
    %s1526 = scalar_lea.sflag [#allocation7], 1
    %1527 = vsyncpa %s1526, 1
    %1528 = vsyncpa [#allocation10], 1
    %1529 = vsyncpa [#allocation13], 1
    %1530 = vsyncpa [#allocation5], 1
    %s1531 = scalar_lea.sflag [#allocation5], 1
    %1532 = vsyncpa %s1531, 1

</llo_original>
